<compile_context>
chip_gen: v5e
topology: v5e:2x2
jax: 0.10.0
libtpu: 0.0.40
codegen_flags: <defaults>
</compile_context>

<pallas_src>
import jax
import jax.numpy as jnp
from jax.experimental import pallas as pl
from jax.experimental.pallas import tpu as pltpu

# ---------------- problem sizes (small, consistent with the module) ---------
B = 2          # batch
T = 8          # tgt_len == src_len (self attention)
E = 32         # embed_dim
H = 4          # num_heads
HD = E // H    # head_dim
G = 2          # number of reader group types
READER_GROUP_WEIGHT = 0.1
SCALING = HD ** (-0.5)


def _attn_kernel(idx_ref,                 # (B,)  int32, SMEM
                 x_ref,                   # (B, T, E)
                 wg_ref, bg_ref,          # (E, 3E), (1, 3E)   fused generic qkv
                 wr_ref, br_ref,          # (G, E, 2E), (G, 1, 2E) fused reader qk
                 wo_ref, bo_ref,          # (H, HD, E), (1, E)
                 o_ref):                  # (B, T, E)
    # One fused projection for both batch rows: (B*T, 3E).  The 1/sqrt(hd)
    # scaling is already folded into the q columns / bias.
    x2d = x_ref[...].reshape(B * T, E)
    qkv_g = jnp.dot(x2d, wg_ref[...],
                    preferred_element_type=jnp.float32) + bg_ref[...]

    for b in range(B):                    # B == 2, static unroll
        # Generic heads: (T, 3E) -> (3H, T, HD); [0:H]=q, [H:2H]=k, [2H:3H]=v.
        gh = jnp.transpose(
            qkv_g[b * T:(b + 1) * T, :].reshape(T, 3 * H, HD), (1, 0, 2))
        qg, kg, vg = gh[:H], gh[H:2 * H], gh[2 * H:]

        # Reader-group fused q/k projection; weights picked in-kernel from the
        # VMEM-resident (G, E, 2E) stack via an SMEM scalar.
        gidx = idx_ref[b]
        qk_r = jnp.dot(x_ref[b], wr_ref[gidx],
                       preferred_element_type=jnp.float32) + br_ref[gidx]
        rh = jnp.transpose(qk_r.reshape(T, 2 * H, HD), (1, 0, 2))  # (2H, T, HD)

        # Stack generic + reader heads so scores and softmax are issued once.
        q_all = jnp.concatenate([qg, rh[:H]], axis=0)              # (2H, T, HD)
        k_all = jnp.concatenate([kg, rh[H:]], axis=0)
        s = jnp.einsum('htd,hsd->hts', q_all, k_all,
                       preferred_element_type=jnp.float32)         # (2H, T, T)

        # Single softmax over both stacks; approx reciprocal runs on the EUP.
        m = jnp.max(s, axis=-1, keepdims=True)
        e = jnp.exp(s - m)
        p = e * pl.reciprocal(jnp.sum(e, axis=-1, keepdims=True), approx=True)
        p_mix = (READER_GROUP_WEIGHT * p[H:]
                 + (1.0 - READER_GROUP_WEIGHT) * p[:H]) * 0.5       # (H, T, T)

        # Attention context over the *generic* value states (as in the module).
        ctx = jnp.einsum('hts,hsd->htd', p_mix, vg,
                         preferred_element_type=jnp.float32)        # (H, T, HD)

        # Output projection as a per-head batched matmul summed over heads:
        #   sum_h ctx[h] @ wo[h*HD:(h+1)*HD, :]  ==  concat_heads(ctx) @ wo
        y = jnp.einsum('htd,hde->hte', ctx, wo_ref[...],
                       preferred_element_type=jnp.float32)          # (H, T, E)
        o_ref[b] = jnp.sum(y, axis=0) + bo_ref[...]


def prepare_params(params):
    """One-time static transform of the module weights into the fused,
    pre-scaled layout the kernel consumes (outside the hot path)."""
    (wq_g, bq_g, wk_g, bk_g, wv_g, bv_g,
     wq_r, bq_r, wk_r, bk_r, wv_r, bv_r, wo, bo) = params
    del wv_r, bv_r  # reader value states never reach the module's output
    wg = jnp.concatenate([wq_g * SCALING, wk_g, wv_g], axis=1)           # (E, 3E)
    bg = jnp.concatenate([bq_g * SCALING, bk_g, bv_g], axis=0)[None, :]  # (1, 3E)
    wr = jnp.concatenate([wq_r * SCALING, wk_r], axis=2)                 # (G, E, 2E)
    br = jnp.concatenate([bq_r * SCALING, bk_r], axis=1)[:, None, :]     # (G, 1, 2E)
    wo_h = wo.reshape(H, HD, E)                                          # (H, HD, E)
    bo2 = bo[None, :]                                                    # (1, E)
    return wg, bg, wr, br, wo_h, bo2


def author_group_attention(x, reader_idx, fused_params):
    """x: (B, T, E) f32, reader_idx: (B,) int32 indices into the G groups."""
    wg, bg, wr, br, wo_h, bo2 = fused_params
    vmem = pl.BlockSpec(memory_space=pltpu.MemorySpace.VMEM)
    smem = pl.BlockSpec(memory_space=pltpu.MemorySpace.SMEM)
    return pl.pallas_call(
        _attn_kernel,
        out_shape=jax.ShapeDtypeStruct((B, T, E), jnp.float32),
        in_specs=[smem, vmem, vmem, vmem, vmem, vmem, vmem, vmem],
        out_specs=vmem,
    )(reader_idx, x, wg, bg, wr, br, wo_h, bo2)


# --------------------------- pure-JAX reference ------------------------------
def _ref_forward(x, reader_idx, params):
    (wq_g, bq_g, wk_g, bk_g, wv_g, bv_g,
     wq_r, bq_r, wk_r, bk_r, wv_r, bv_r, wo, bo) = params

    def heads(t):  # (T, E) -> (H, T, HD)
        return t.reshape(T, H, HD).transpose(1, 0, 2)

    outs = []
    for b in range(B):
        xb = x[b]
        g = int(reader_idx[b])
        qg = heads((xb @ wq_g + bq_g) * SCALING)
        kg = heads(xb @ wk_g + bk_g)
        vg = heads(xb @ wv_g + bv_g)
        qr = heads((xb @ wq_r[g] + bq_r[g]) * SCALING)
        kr = heads(xb @ wk_r[g] + bk_r[g])

        pg = jax.nn.softmax(jnp.einsum('htd,hsd->hts', qg, kg), axis=-1)
        pr = jax.nn.softmax(jnp.einsum('htd,hsd->hts', qr, kr), axis=-1)
        p = (READER_GROUP_WEIGHT * pr + (1.0 - READER_GROUP_WEIGHT) * pg) / 2.0
        ao = jnp.einsum('hts,hsd->htd', p, vg)            # (H, T, HD)
        ao = ao.transpose(1, 0, 2).reshape(T, E)
        outs.append(ao @ wo + bo)
    return jnp.stack(outs, axis=0)


# ------------------------------------ main -----------------------------------
if __name__ == "__main__":
    key = jax.random.PRNGKey(0)
    ks = jax.random.split(key, 16)

    def w(k):  # (E, E) weight, already transposed to (in, out)
        return (jax.random.normal(k, (E, E), jnp.float32) * 0.05)

    def wg_stack(k):  # (G, E, E) stacked reader-group weights
        return (jax.random.normal(k, (G, E, E), jnp.float32) * 0.05)

    params = (
        w(ks[0]), jax.random.normal(ks[1], (E,), jnp.float32) * 0.02,           # q_proj
        w(ks[2]), jax.random.normal(ks[3], (E,), jnp.float32) * 0.02,           # k_proj
        w(ks[4]), jax.random.normal(ks[5], (E,), jnp.float32) * 0.02,           # v_proj
        wg_stack(ks[6]), jax.random.normal(ks[7], (G, E), jnp.float32) * 0.02,  # reader_q
        wg_stack(ks[8]), jax.random.normal(ks[9], (G, E), jnp.float32) * 0.02,  # reader_k
        wg_stack(ks[10]), jax.random.normal(ks[11], (G, E), jnp.float32) * 0.02,# reader_v
        w(ks[12]), jax.random.normal(ks[13], (E,), jnp.float32) * 0.02,         # out_proj
    )

    x = jax.random.normal(ks[14], (B, T, E), jnp.float32)
    # reader_token = ["group0", "group1"] mapped to integer group indices
    reader_idx = jnp.array([0, 1], dtype=jnp.int32)

    fused = prepare_params(params)           # one-time static weight transform
    out = author_group_attention(x, reader_idx, fused)
    jax.block_until_ready(out)

    ref = _ref_forward(x, reader_idx, params)
    assert out.shape == (B, T, E)
    # Tolerance relaxed vs exact f32 because pl.reciprocal(approx=True) adds
    # ~2^-12 relative error in the softmax denominator.
    assert jnp.allclose(out, ref, atol=1e-3, rtol=1e-3), "mismatch vs reference"

    print("KERNEL_OK")
</pallas_src>

<mosaic_0001>
module attributes {stable_mosaic.version = 11 : i64} {
  func.func @_attn_kernel(%arg0: memref<2xi32, #tpu.memory_space<smem>>, %arg1: memref<2x8x32xf32, #tpu.memory_space<vmem>>, %arg2: memref<32x96xf32, #tpu.memory_space<vmem>>, %arg3: memref<1x96xf32, #tpu.memory_space<vmem>>, %arg4: memref<2x32x64xf32, #tpu.memory_space<vmem>>, %arg5: memref<2x1x64xf32, #tpu.memory_space<vmem>>, %arg6: memref<4x8x32xf32, #tpu.memory_space<vmem>>, %arg7: memref<1x32xf32, #tpu.memory_space<vmem>>, %arg8: memref<2x8x32xf32, #tpu.memory_space<vmem>>) attributes {dimension_semantics = [], scalar_prefetch = 0 : i64, scratch_operands = 0 : i64, tpu.core_type = #tpu.core_type<tc>} {
    %c0 = arith.constant 0 : index
    %c0_0 = arith.constant 0 : index
    %c0_1 = arith.constant 0 : index
    %0 = vector.load %arg1[%c0, %c0_0, %c0_1] : memref<2x8x32xf32, #tpu.memory_space<vmem>>, vector<2x8x32xf32>
    %1 = vector.shape_cast %0 : vector<2x8x32xf32> to vector<16x32xf32>
    %c0_2 = arith.constant 0 : index
    %c0_3 = arith.constant 0 : index
    %2 = vector.load %arg2[%c0_2, %c0_3] : memref<32x96xf32, #tpu.memory_space<vmem>>, vector<32x96xf32>
    %cst = arith.constant dense<0.000000e+00> : vector<16x96xf32>
    %3 = tpu.matmul %1, %2, %cst {dimension_numbers = #tpu.dot_dimension_numbers<[1], [0], [0], [1], [0, 0, 1, 1], [], []>} : vector<16x32xf32>, vector<32x96xf32>, vector<16x96xf32> -> vector<16x96xf32>
    %c0_4 = arith.constant 0 : index
    %c0_5 = arith.constant 0 : index
    %4 = vector.load %arg3[%c0_4, %c0_5] : memref<1x96xf32, #tpu.memory_space<vmem>>, vector<1x96xf32>
    %5 = vector.broadcast %4 : vector<1x96xf32> to vector<16x96xf32>
    %6 = arith.addf %3, %5 : vector<16x96xf32>
    %7 = vector.extract_strided_slice %6 {offsets = [0, 0], sizes = [8, 96], strides = [1, 1]} : vector<16x96xf32> to vector<8x96xf32>
    %8 = vector.shape_cast %7 : vector<8x96xf32> to vector<8x12x8xf32>
    %9 = tpu.transpose %8, [1, 0, 2] : vector<8x12x8xf32> -> vector<12x8x8xf32>
    %10 = vector.extract_strided_slice %9 {offsets = [0, 0, 0], sizes = [4, 8, 8], strides = [1, 1, 1]} : vector<12x8x8xf32> to vector<4x8x8xf32>
    %11 = vector.extract_strided_slice %9 {offsets = [4, 0, 0], sizes = [4, 8, 8], strides = [1, 1, 1]} : vector<12x8x8xf32> to vector<4x8x8xf32>
    %12 = vector.extract_strided_slice %9 {offsets = [8, 0, 0], sizes = [4, 8, 8], strides = [1, 1, 1]} : vector<12x8x8xf32> to vector<4x8x8xf32>
    %c0_6 = arith.constant 0 : index
    %13 = memref.load %arg0[%c0_6] : memref<2xi32, #tpu.memory_space<smem>>
    %c0_7 = arith.constant 0 : index
    %c0_8 = arith.constant 0 : index
    %c0_9 = arith.constant 0 : index
    %14 = vector.load %arg1[%c0_7, %c0_8, %c0_9] : memref<2x8x32xf32, #tpu.memory_space<vmem>>, vector<1x8x32xf32>
    %15 = vector.shape_cast %14 : vector<1x8x32xf32> to vector<8x32xf32>
    %16 = arith.index_cast %13 : i32 to index
    %c0_10 = arith.constant 0 : index
    %c0_11 = arith.constant 0 : index
    %17 = vector.load %arg4[%16, %c0_10, %c0_11] : memref<2x32x64xf32, #tpu.memory_space<vmem>>, vector<1x32x64xf32>
    %18 = vector.shape_cast %17 : vector<1x32x64xf32> to vector<32x64xf32>
    %cst_12 = arith.constant dense<0.000000e+00> : vector<8x64xf32>
    %19 = tpu.matmul %15, %18, %cst_12 {dimension_numbers = #tpu.dot_dimension_numbers<[1], [0], [0], [1], [0, 0, 1, 1], [], []>} : vector<8x32xf32>, vector<32x64xf32>, vector<8x64xf32> -> vector<8x64xf32>
    %20 = arith.index_cast %13 : i32 to index
    %c0_13 = arith.constant 0 : index
    %c0_14 = arith.constant 0 : index
    %21 = vector.load %arg5[%20, %c0_13, %c0_14] : memref<2x1x64xf32, #tpu.memory_space<vmem>>, vector<1x1x64xf32>
    %22 = vector.shape_cast %21 : vector<1x1x64xf32> to vector<1x64xf32>
    %23 = vector.broadcast %22 : vector<1x64xf32> to vector<8x64xf32>
    %24 = arith.addf %19, %23 : vector<8x64xf32>
    %25 = vector.shape_cast %24 : vector<8x64xf32> to vector<8x8x8xf32>
    %26 = tpu.transpose %25, [1, 0, 2] : vector<8x8x8xf32> -> vector<8x8x8xf32>
    %27 = vector.extract_strided_slice %26 {offsets = [0, 0, 0], sizes = [4, 8, 8], strides = [1, 1, 1]} : vector<8x8x8xf32> to vector<4x8x8xf32>
    %28 = tpu.concatenate %10, %27 in 0 : vector<4x8x8xf32>, vector<4x8x8xf32> -> vector<8x8x8xf32>
    %29 = vector.extract_strided_slice %26 {offsets = [4, 0, 0], sizes = [4, 8, 8], strides = [1, 1, 1]} : vector<8x8x8xf32> to vector<4x8x8xf32>
    %30 = tpu.concatenate %11, %29 in 0 : vector<4x8x8xf32>, vector<4x8x8xf32> -> vector<8x8x8xf32>
    "tpu.trace_start"() <{level = 10 : i32, message = "htd,hsd->hts"}> : () -> ()
    %cst_15 = arith.constant dense<0.000000e+00> : vector<8x8x8xf32>
    %31 = tpu.matmul %28, %30, %cst_15 {dimension_numbers = #tpu.dot_dimension_numbers<[2], [2], [1], [1], [0, 0, 0, 1, 1, 1], [0], [0]>} : vector<8x8x8xf32>, vector<8x8x8xf32>, vector<8x8x8xf32> -> vector<8x8x8xf32>
    "tpu.trace_stop"() : () -> ()
    %cst_16 = arith.constant dense<0xFF800000> : vector<8x8xf32>
    %32 = vector.multi_reduction <maximumf>, %31, %cst_16 [2] : vector<8x8x8xf32> to vector<8x8xf32>
    %33 = vector.shape_cast %32 : vector<8x8xf32> to vector<8x8x1xf32>
    %34 = vector.broadcast %33 : vector<8x8x1xf32> to vector<8x8x8xf32>
    %35 = arith.subf %31, %34 : vector<8x8x8xf32>
    %36 = math.exp %35 : vector<8x8x8xf32>
    %cst_17 = arith.constant dense<0.000000e+00> : vector<8x8xf32>
    %37 = vector.multi_reduction <add>, %36, %cst_17 [2] : vector<8x8x8xf32> to vector<8x8xf32>
    %38 = vector.shape_cast %37 : vector<8x8xf32> to vector<8x8x1xf32>
    %39 = tpu.reciprocal %38 {approx = true} : vector<8x8x1xf32> -> vector<8x8x1xf32>
    %40 = vector.broadcast %39 : vector<8x8x1xf32> to vector<8x8x8xf32>
    %41 = arith.mulf %36, %40 : vector<8x8x8xf32>
    %42 = vector.extract_strided_slice %41 {offsets = [4, 0, 0], sizes = [4, 8, 8], strides = [1, 1, 1]} : vector<8x8x8xf32> to vector<4x8x8xf32>
    %cst_18 = arith.constant 1.000000e-01 : f32
    %43 = vector.broadcast %cst_18 : f32 to vector<4x8x8xf32>
    %44 = arith.mulf %43, %42 : vector<4x8x8xf32>
    %45 = vector.extract_strided_slice %41 {offsets = [0, 0, 0], sizes = [4, 8, 8], strides = [1, 1, 1]} : vector<8x8x8xf32> to vector<4x8x8xf32>
    %cst_19 = arith.constant 0.899999976 : f32
    %46 = vector.broadcast %cst_19 : f32 to vector<4x8x8xf32>
    %47 = arith.mulf %46, %45 : vector<4x8x8xf32>
    %48 = arith.addf %44, %47 : vector<4x8x8xf32>
    %cst_20 = arith.constant 5.000000e-01 : f32
    %49 = vector.broadcast %cst_20 : f32 to vector<4x8x8xf32>
    %50 = arith.mulf %48, %49 : vector<4x8x8xf32>
    "tpu.trace_start"() <{level = 10 : i32, message = "hts,hsd->htd"}> : () -> ()
    %cst_21 = arith.constant dense<0.000000e+00> : vector<4x8x8xf32>
    %51 = tpu.matmul %50, %12, %cst_21 {dimension_numbers = #tpu.dot_dimension_numbers<[2], [1], [1], [2], [0, 0, 0, 1, 1, 2], [0], [0]>} : vector<4x8x8xf32>, vector<4x8x8xf32>, vector<4x8x8xf32> -> vector<4x8x8xf32>
    "tpu.trace_stop"() : () -> ()
    %c0_22 = arith.constant 0 : index
    %c0_23 = arith.constant 0 : index
    %c0_24 = arith.constant 0 : index
    %52 = vector.load %arg6[%c0_22, %c0_23, %c0_24] : memref<4x8x32xf32, #tpu.memory_space<vmem>>, vector<4x8x32xf32>
    "tpu.trace_start"() <{level = 10 : i32, message = "htd,hde->hte"}> : () -> ()
    %cst_25 = arith.constant dense<0.000000e+00> : vector<4x8x32xf32>
    %53 = tpu.matmul %51, %52, %cst_25 {dimension_numbers = #tpu.dot_dimension_numbers<[2], [1], [1], [2], [0, 0, 0, 1, 1, 2], [0], [0]>} : vector<4x8x8xf32>, vector<4x8x32xf32>, vector<4x8x32xf32> -> vector<4x8x32xf32>
    "tpu.trace_stop"() : () -> ()
    %cst_26 = arith.constant dense<0.000000e+00> : vector<8x32xf32>
    %54 = vector.multi_reduction <add>, %53, %cst_26 [0] : vector<4x8x32xf32> to vector<8x32xf32>
    %c0_27 = arith.constant 0 : index
    %c0_28 = arith.constant 0 : index
    %55 = vector.load %arg7[%c0_27, %c0_28] : memref<1x32xf32, #tpu.memory_space<vmem>>, vector<1x32xf32>
    %56 = vector.broadcast %55 : vector<1x32xf32> to vector<8x32xf32>
    %57 = arith.addf %54, %56 : vector<8x32xf32>
    %c0_29 = arith.constant 0 : index
    %c0_30 = arith.constant 0 : index
    %c0_31 = arith.constant 0 : index
    %58 = vector.load %arg8[%c0_29, %c0_30, %c0_31] : memref<2x8x32xf32, #tpu.memory_space<vmem>>, vector<1x8x32xf32>
    %59 = vector.shape_cast %58 : vector<1x8x32xf32> to vector<8x32xf32>
    %60 = vector.shape_cast %57 : vector<8x32xf32> to vector<1x8x32xf32>
    tpu.vector_store %arg8[%c0_29, %c0_30, %c0_31], %60 {strides = array<i32>} : memref<2x8x32xf32, #tpu.memory_space<vmem>>, vector<1x8x32xf32>,
    %61 = vector.extract_strided_slice %6 {offsets = [8, 0], sizes = [8, 96], strides = [1, 1]} : vector<16x96xf32> to vector<8x96xf32>
    %62 = vector.shape_cast %61 : vector<8x96xf32> to vector<8x12x8xf32>
    %63 = tpu.transpose %62, [1, 0, 2] : vector<8x12x8xf32> -> vector<12x8x8xf32>
    %64 = vector.extract_strided_slice %63 {offsets = [0, 0, 0], sizes = [4, 8, 8], strides = [1, 1, 1]} : vector<12x8x8xf32> to vector<4x8x8xf32>
    %65 = vector.extract_strided_slice %63 {offsets = [4, 0, 0], sizes = [4, 8, 8], strides = [1, 1, 1]} : vector<12x8x8xf32> to vector<4x8x8xf32>
    %66 = vector.extract_strided_slice %63 {offsets = [8, 0, 0], sizes = [4, 8, 8], strides = [1, 1, 1]} : vector<12x8x8xf32> to vector<4x8x8xf32>
    %c1 = arith.constant 1 : index
    %67 = memref.load %arg0[%c1] : memref<2xi32, #tpu.memory_space<smem>>
    %c1_32 = arith.constant 1 : index
    %c0_33 = arith.constant 0 : index
    %c0_34 = arith.constant 0 : index
    %68 = vector.load %arg1[%c1_32, %c0_33, %c0_34] : memref<2x8x32xf32, #tpu.memory_space<vmem>>, vector<1x8x32xf32>
    %69 = vector.shape_cast %68 : vector<1x8x32xf32> to vector<8x32xf32>
    %70 = arith.index_cast %67 : i32 to index
    %c0_35 = arith.constant 0 : index
    %c0_36 = arith.constant 0 : index
    %71 = vector.load %arg4[%70, %c0_35, %c0_36] : memref<2x32x64xf32, #tpu.memory_space<vmem>>, vector<1x32x64xf32>
    %72 = vector.shape_cast %71 : vector<1x32x64xf32> to vector<32x64xf32>
    %cst_37 = arith.constant dense<0.000000e+00> : vector<8x64xf32>
    %73 = tpu.matmul %69, %72, %cst_37 {dimension_numbers = #tpu.dot_dimension_numbers<[1], [0], [0], [1], [0, 0, 1, 1], [], []>} : vector<8x32xf32>, vector<32x64xf32>, vector<8x64xf32> -> vector<8x64xf32>
    %74 = arith.index_cast %67 : i32 to index
    %c0_38 = arith.constant 0 : index
    %c0_39 = arith.constant 0 : index
    %75 = vector.load %arg5[%74, %c0_38, %c0_39] : memref<2x1x64xf32, #tpu.memory_space<vmem>>, vector<1x1x64xf32>
    %76 = vector.shape_cast %75 : vector<1x1x64xf32> to vector<1x64xf32>
    %77 = vector.broadcast %76 : vector<1x64xf32> to vector<8x64xf32>
    %78 = arith.addf %73, %77 : vector<8x64xf32>
    %79 = vector.shape_cast %78 : vector<8x64xf32> to vector<8x8x8xf32>
    %80 = tpu.transpose %79, [1, 0, 2] : vector<8x8x8xf32> -> vector<8x8x8xf32>
    %81 = vector.extract_strided_slice %80 {offsets = [0, 0, 0], sizes = [4, 8, 8], strides = [1, 1, 1]} : vector<8x8x8xf32> to vector<4x8x8xf32>
    %82 = tpu.concatenate %64, %81 in 0 : vector<4x8x8xf32>, vector<4x8x8xf32> -> vector<8x8x8xf32>
    %83 = vector.extract_strided_slice %80 {offsets = [4, 0, 0], sizes = [4, 8, 8], strides = [1, 1, 1]} : vector<8x8x8xf32> to vector<4x8x8xf32>
    %84 = tpu.concatenate %65, %83 in 0 : vector<4x8x8xf32>, vector<4x8x8xf32> -> vector<8x8x8xf32>
    "tpu.trace_start"() <{level = 10 : i32, message = "htd,hsd->hts"}> : () -> ()
    %cst_40 = arith.constant dense<0.000000e+00> : vector<8x8x8xf32>
    %85 = tpu.matmul %82, %84, %cst_40 {dimension_numbers = #tpu.dot_dimension_numbers<[2], [2], [1], [1], [0, 0, 0, 1, 1, 1], [0], [0]>} : vector<8x8x8xf32>, vector<8x8x8xf32>, vector<8x8x8xf32> -> vector<8x8x8xf32>
    "tpu.trace_stop"() : () -> ()
    %cst_41 = arith.constant dense<0xFF800000> : vector<8x8xf32>
    %86 = vector.multi_reduction <maximumf>, %85, %cst_41 [2] : vector<8x8x8xf32> to vector<8x8xf32>
    %87 = vector.shape_cast %86 : vector<8x8xf32> to vector<8x8x1xf32>
    %88 = vector.broadcast %87 : vector<8x8x1xf32> to vector<8x8x8xf32>
    %89 = arith.subf %85, %88 : vector<8x8x8xf32>
    %90 = math.exp %89 : vector<8x8x8xf32>
    %cst_42 = arith.constant dense<0.000000e+00> : vector<8x8xf32>
    %91 = vector.multi_reduction <add>, %90, %cst_42 [2] : vector<8x8x8xf32> to vector<8x8xf32>
    %92 = vector.shape_cast %91 : vector<8x8xf32> to vector<8x8x1xf32>
    %93 = tpu.reciprocal %92 {approx = true} : vector<8x8x1xf32> -> vector<8x8x1xf32>
    %94 = vector.broadcast %93 : vector<8x8x1xf32> to vector<8x8x8xf32>
    %95 = arith.mulf %90, %94 : vector<8x8x8xf32>
    %96 = vector.extract_strided_slice %95 {offsets = [4, 0, 0], sizes = [4, 8, 8], strides = [1, 1, 1]} : vector<8x8x8xf32> to vector<4x8x8xf32>
    %cst_43 = arith.constant 1.000000e-01 : f32
    %97 = vector.broadcast %cst_43 : f32 to vector<4x8x8xf32>
    %98 = arith.mulf %97, %96 : vector<4x8x8xf32>
    %99 = vector.extract_strided_slice %95 {offsets = [0, 0, 0], sizes = [4, 8, 8], strides = [1, 1, 1]} : vector<8x8x8xf32> to vector<4x8x8xf32>
    %cst_44 = arith.constant 0.899999976 : f32
    %100 = vector.broadcast %cst_44 : f32 to vector<4x8x8xf32>
    %101 = arith.mulf %100, %99 : vector<4x8x8xf32>
    %102 = arith.addf %98, %101 : vector<4x8x8xf32>
    %cst_45 = arith.constant 5.000000e-01 : f32
    %103 = vector.broadcast %cst_45 : f32 to vector<4x8x8xf32>
    %104 = arith.mulf %102, %103 : vector<4x8x8xf32>
    "tpu.trace_start"() <{level = 10 : i32, message = "hts,hsd->htd"}> : () -> ()
    %cst_46 = arith.constant dense<0.000000e+00> : vector<4x8x8xf32>
    %105 = tpu.matmul %104, %66, %cst_46 {dimension_numbers = #tpu.dot_dimension_numbers<[2], [1], [1], [2], [0, 0, 0, 1, 1, 2], [0], [0]>} : vector<4x8x8xf32>, vector<4x8x8xf32>, vector<4x8x8xf32> -> vector<4x8x8xf32>
    "tpu.trace_stop"() : () -> ()
    %c0_47 = arith.constant 0 : index
    %c0_48 = arith.constant 0 : index
    %c0_49 = arith.constant 0 : index
    %106 = vector.load %arg6[%c0_47, %c0_48, %c0_49] : memref<4x8x32xf32, #tpu.memory_space<vmem>>, vector<4x8x32xf32>
    "tpu.trace_start"() <{level = 10 : i32, message = "htd,hde->hte"}> : () -> ()
    %cst_50 = arith.constant dense<0.000000e+00> : vector<4x8x32xf32>
    %107 = tpu.matmul %105, %106, %cst_50 {dimension_numbers = #tpu.dot_dimension_numbers<[2], [1], [1], [2], [0, 0, 0, 1, 1, 2], [0], [0]>} : vector<4x8x8xf32>, vector<4x8x32xf32>, vector<4x8x32xf32> -> vector<4x8x32xf32>
    "tpu.trace_stop"() : () -> ()
    %cst_51 = arith.constant dense<0.000000e+00> : vector<8x32xf32>
    %108 = vector.multi_reduction <add>, %107, %cst_51 [0] : vector<4x8x32xf32> to vector<8x32xf32>
    %c0_52 = arith.constant 0 : index
    %c0_53 = arith.constant 0 : index
    %109 = vector.load %arg7[%c0_52, %c0_53] : memref<1x32xf32, #tpu.memory_space<vmem>>, vector<1x32xf32>
    %110 = vector.broadcast %109 : vector<1x32xf32> to vector<8x32xf32>
    %111 = arith.addf %108, %110 : vector<8x32xf32>
    %c1_54 = arith.constant 1 : index
    %c0_55 = arith.constant 0 : index
    %c0_56 = arith.constant 0 : index
    %112 = vector.load %arg8[%c1_54, %c0_55, %c0_56] : memref<2x8x32xf32, #tpu.memory_space<vmem>>, vector<1x8x32xf32>
    %113 = vector.shape_cast %112 : vector<1x8x32xf32> to vector<8x32xf32>
    %114 = vector.shape_cast %111 : vector<8x32xf32> to vector<1x8x32xf32>
    tpu.vector_store %arg8[%c1_54, %c0_55, %c0_56], %114 {strides = array<i32>} : memref<2x8x32xf32, #tpu.memory_space<vmem>>, vector<1x8x32xf32>,
    return
  }
}

</mosaic_0001>

<llo_original>
// kernel: tpu_custom_call.1
$region0: #{tpu_custom_call.1}
  #allocation0 [shape = 'u32[]', space=smem, size = 0x4, offset = 0x4, fixed_abs, tag = 'smem constant byte address 0x4 - core index']
  #allocation1 [shape = 'u32[72,128]{1,0:T(1,128)}', space=vmem, size = 0x9000, scoped, tag = 'internal scratch']
  %s0 = inlined_call_operand.hbm [shape: s32[2], index: 0, kind: input, shape index: {}]
  %s1 = inlined_call_operand.hbm [shape: f32[2,8,32], index: 1, kind: input, shape index: {}]
  %s2 = inlined_call_operand.hbm [shape: f32[32,96], index: 2, kind: input, shape index: {}]
  %s3 = inlined_call_operand.vmem [shape: f32[1,96], index: 3, kind: input, shape index: {}]
  %s4 = inlined_call_operand.hbm [shape: f32[2,32,64], index: 4, kind: input, shape index: {}]
  %s5 = inlined_call_operand.vmem [shape: f32[2,1,64], index: 5, kind: input, shape index: {}]
  %s6 = inlined_call_operand.hbm [shape: f32[4,8,32], index: 6, kind: input, shape index: {}]
  %s7 = inlined_call_operand.vmem [shape: f32[1,32], index: 7, kind: input, shape index: {}]
  %s8 = inlined_call_operand.hbm [shape: f32[2,8,32], index: 8, kind: output, shape index: {}]
  %s9 = sld [smem:[#allocation0]]
  $region62: #{tpu_custom_call.1} parent=0
    _
  %s11 = ssub.s32 1, %s9
  %s12 = scalar_select 0, %s11, %s9
  $region1: #{tpu_custom_call.1} parent=0
    #allocation2 [shape = 'u8[512]{0}', space=smem, size = 0x200, scoped, tag = 'input window, operand 0, single buffered']
    #allocation3 [shape = 's32[1]{0}', space=sflag, size = 0x4, scoped, tag = 'scoped memory for tpu_custom_call.1']
    #allocation4 [shape = 's32[1]{0}', space=sflag, size = 0x4, scoped, tag = 'scoped memory for tpu_custom_call.1']
    #allocation5 [shape = 's32[1]{0}', space=sflag, size = 0x4, scoped, tag = 'scoped memory for tpu_custom_call.1']
    #allocation6 [shape = 'u8[8192]{0}', space=vmem, size = 0x2000, scoped, tag = 'input window, operand 1, single buffered']
    #allocation7 [shape = 'u8[16384]{0}', space=vmem, size = 0x4000, scoped, tag = 'input window, operand 2, single buffered']
    #allocation8 [shape = 's32[1]{0}', space=sflag, size = 0x4, scoped, tag = 'scoped memory for tpu_custom_call.1']
    #allocation9 [shape = 'u8[32768]{0}', space=vmem, size = 0x8000, scoped, tag = 'input window, operand 4, single buffered']
    #allocation10 [shape = 'u8[16384]{0}', space=vmem, size = 0x4000, scoped, tag = 'input window, operand 6, single buffered']
    #allocation11 [shape = 's32[1]{0}', space=sflag, size = 0x4, scoped, tag = 'scoped memory for tpu_custom_call.1']
    #allocation12 [shape = 'u8[8192]{0}', space=vmem, size = 0x2000, scoped, tag = 'output window, operand 0, single buffered']
    %13 = vsyncpa [#allocation5], 0
    %14 = vsyncpa [#allocation3], 0
    %15 = vsyncpa [#allocation8], 0
    %16 = vsyncpa [#allocation11], 0
    %17 = vsyncpa [#allocation4], 0
    // Predicated region
    $region2: #{tpu_custom_call.1} parent=1 // pred_check
      _
    $region3: #{tpu_custom_call.1} parent=1 // pred_check_branch
      %19 = sbr.rel (0) target = $region5
    $region4: #{tpu_custom_call.1} parent=1 // pred_region
      %21 = vsyncadd [#allocation5], 0
      %s23 = sshll.u32 %s0, 4
      %s24 = int_to_ptr.hbm [resolvable:$true] %s23
      %26 = dma.hbm_to_smem %s24, 16, [#allocation2], [#allocation5]
    $region5: #{tpu_custom_call.1} parent=1 // pred_fallthru
      _
    // Predicated region
    $region6: #{tpu_custom_call.1} parent=1 // pred_check
      _
    $region7: #{tpu_custom_call.1} parent=1 // pred_check_branch
      %28 = sbr.rel (0) target = $region9
    $region8: #{tpu_custom_call.1} parent=1 // pred_region
      %30 = vsyncadd [#allocation3], 0
      %s31 = sshll.u32 %s1, 4
      %s32 = int_to_ptr.hbm [resolvable:$true] %s31
      %s33 = sshll.u32 [#allocation6], 4
      %s34 = int_to_ptr.vmem [resolvable:$true] %s33
      %39 = dma.hbm_to_vmem [thread:$0]  %s32, 256, %s34, [#allocation3], 128, 128, 8
    $region9: #{tpu_custom_call.1} parent=1 // pred_fallthru
      _
    // Predicated region
    $region10: #{tpu_custom_call.1} parent=1 // pred_check
      _
    $region11: #{tpu_custom_call.1} parent=1 // pred_check_branch
      %41 = sbr.rel (0) target = $region13
    $region12: #{tpu_custom_call.1} parent=1 // pred_region
      %43 = vsyncadd [#allocation8], 0
      %s44 = sshll.u32 %s2, 4
      %s45 = int_to_ptr.hbm [resolvable:$true] %s44
      %s46 = sshll.u32 [#allocation7], 4
      %s47 = int_to_ptr.vmem [resolvable:$true] %s46
      %52 = dma.hbm_to_vmem [thread:$0]  %s45, 512, %s47, [#allocation8], 128, 128, 8
    $region13: #{tpu_custom_call.1} parent=1 // pred_fallthru
      _
    // Predicated region
    $region14: #{tpu_custom_call.1} parent=1 // pred_check
      _
    $region15: #{tpu_custom_call.1} parent=1 // pred_check_branch
      %54 = sbr.rel (0) target = $region17
    $region16: #{tpu_custom_call.1} parent=1 // pred_region
      _
    $region17: #{tpu_custom_call.1} parent=1 // pred_fallthru
      _
    // Predicated region
    $region18: #{tpu_custom_call.1} parent=1 // pred_check
      _
    $region19: #{tpu_custom_call.1} parent=1 // pred_check_branch
      %56 = sbr.rel (0) target = $region21
    $region20: #{tpu_custom_call.1} parent=1 // pred_region
      %58 = vsyncadd [#allocation8], 0
      %s59 = sshll.u32 %s4, 4
      %s60 = int_to_ptr.hbm [resolvable:$true] %s59
      %s61 = sshll.u32 [#allocation9], 4
      %s62 = int_to_ptr.vmem [resolvable:$true] %s61
      %67 = dma.hbm_to_vmem [thread:$0]  %s60, 1024, %s62, [#allocation8], 128, 128, 8
    $region21: #{tpu_custom_call.1} parent=1 // pred_fallthru
      _
    // Predicated region
    $region22: #{tpu_custom_call.1} parent=1 // pred_check
      _
    $region23: #{tpu_custom_call.1} parent=1 // pred_check_branch
      %69 = sbr.rel (0) target = $region25
    $region24: #{tpu_custom_call.1} parent=1 // pred_region
      _
    $region25: #{tpu_custom_call.1} parent=1 // pred_fallthru
      _
    // Predicated region
    $region26: #{tpu_custom_call.1} parent=1 // pred_check
      _
    $region27: #{tpu_custom_call.1} parent=1 // pred_check_branch
      %71 = sbr.rel (0) target = $region29
    $region28: #{tpu_custom_call.1} parent=1 // pred_region
      %73 = vsyncadd [#allocation11], 0
      %s74 = sshll.u32 %s6, 4
      %s75 = int_to_ptr.hbm [resolvable:$true] %s74
      %s76 = sshll.u32 [#allocation10], 4
      %s77 = int_to_ptr.vmem [resolvable:$true] %s76
      %82 = dma.hbm_to_vmem [thread:$0]  %s75, 512, %s77, [#allocation11], 128, 128, 8
    $region29: #{tpu_custom_call.1} parent=1 // pred_fallthru
      _
    // Predicated region
    $region30: #{tpu_custom_call.1} parent=1 // pred_check
      _
    $region31: #{tpu_custom_call.1} parent=1 // pred_check_branch
      %84 = sbr.rel (0) target = $region33
    $region32: #{tpu_custom_call.1} parent=1 // pred_region
      _
    $region33: #{tpu_custom_call.1} parent=1 // pred_fallthru
      _
    // Predicated region
    $region34: #{tpu_custom_call.1} parent=1 // pred_check
      _
    $region35: #{tpu_custom_call.1} parent=1 // pred_check_branch
      %86 = sbr.rel (0) target = $region37
    $region36: #{tpu_custom_call.1} parent=1 // pred_region
      %88 = dma.done [#allocation5], 16
    $region37: #{tpu_custom_call.1} parent=1 // pred_fallthru
      _
    // Predicated region
    $region38: #{tpu_custom_call.1} parent=1 // pred_check
      _
    $region39: #{tpu_custom_call.1} parent=1 // pred_check_branch
      %90 = sbr.rel (0) target = $region41
    $region40: #{tpu_custom_call.1} parent=1 // pred_region
      %92 = dma.done [#allocation3], 256
    $region41: #{tpu_custom_call.1} parent=1 // pred_fallthru
      _
    // Predicated region
    $region42: #{tpu_custom_call.1} parent=1 // pred_check
      _
    $region43: #{tpu_custom_call.1} parent=1 // pred_check_branch
      %94 = sbr.rel (0) target = $region45
    $region44: #{tpu_custom_call.1} parent=1 // pred_region
      %96 = dma.done [#allocation8], 512
    $region45: #{tpu_custom_call.1} parent=1 // pred_fallthru
      _
    // Predicated region
    $region46: #{tpu_custom_call.1} parent=1 // pred_check
      _
    $region47: #{tpu_custom_call.1} parent=1 // pred_check_branch
      %98 = sbr.rel (0) target = $region49
    $region48: #{tpu_custom_call.1} parent=1 // pred_region
      %100 = dma.done [#allocation8], 1024
    $region49: #{tpu_custom_call.1} parent=1 // pred_fallthru
      _
    // Predicated region
    $region50: #{tpu_custom_call.1} parent=1 // pred_check
      _
    $region51: #{tpu_custom_call.1} parent=1 // pred_check_branch
      %102 = sbr.rel (0) target = $region53
    $region52: #{tpu_custom_call.1} parent=1 // pred_region
      %104 = dma.done [#allocation11], 512
    $region53: #{tpu_custom_call.1} parent=1 // pred_fallthru
      _
    %105 = sfence
    %v106 = vld [vmem:[#allocation6] sm:$0xff]
    %v107 = vld [vmem:[#allocation6 + $0x8] sm:$0xff]
    %v108 = vld [vmem:[#allocation7] sm:$0xff]
    %v109 = vld [vmem:[#allocation7 + $0x8] sm:$0xff]
    %v110 = vld [vmem:[#allocation7 + $0x10] sm:$0xff]
    %v111 = vld [vmem:[#allocation7 + $0x18] sm:$0xff]
    %v112 = vld [vmem:[%s3] sm:$0x1]
    %v114 = vperm.slane %v112, 0
    %vm116 = vcmask 261120
    %v118 = vsel %vm116, %v106, 0
    %v121 = vsel %vm116, %v107, 0
    %123 = vmatpush.msra.mxu0 0.0
    %124 = vmatpush.msra.mxu0 0.0
    %125 = vmatpush.msra.mxu0 0.0
    %126 = vmatpush.msra.mxu0 0.0
    %127 = vmatpush.msra.mxu0 0.0
    %128 = vmatpush.msra.mxu0 0.0
    %129 = vmatpush.msra.mxu0 0.0
    %130 = vmatpush.msra.mxu0 0.0
    %131 = vmatpush.msra.mxu0 0.0
    %132 = vmatpush.msra.mxu0 0.0
    %133 = vmatpush.msra.mxu0 0.0
    %134 = vmatpush.msra.mxu0 0.0
    %135 = vmatpush.msra.mxu0 %v111
    %136 = vmatpush.msra.mxu0 %v110
    %137 = vmatpush.msra.mxu0 %v109
    %138 = vmatpush.msra.mxu0 %v108
    %139 = vmatmul.f32.gmra.mxu0 %v118
    %v140 = vpop.f32.mrf.mxu0
    %v141 = vadd.f32 %v114, %v140
    %142 = vmatmul.f32.gmra.mxu0 %v121
    %v143 = vpop.f32.mrf.mxu0
    %v144 = vadd.f32 %v114, %v143
    %145 = vdwg.mxu0
    %147 = vrot.lane.b32.xlu0 %v141, 120
    %v148 = vpop.permute.xlu0 %147
    %150 = vrot.lane.b32.xlu0 %v141, 112
    %v151 = vpop.permute.xlu0 %150
    %153 = vrot.lane.b32.xlu0 %v141, 104
    %v154 = vpop.permute.xlu0 %153
    %156 = vrot.lane.b32.xlu0 %v141, 96
    %v157 = vpop.permute.xlu0 %156
    %159 = vrot.lane.b32.xlu0 %v141, 88
    %v160 = vpop.permute.xlu0 %159
    %162 = vrot.lane.b32.xlu0 %v141, 80
    %v163 = vpop.permute.xlu0 %162
    %165 = vrot.lane.b32.xlu0 %v141, 72
    %v166 = vpop.permute.xlu0 %165
    %168 = vrot.lane.b32.xlu0 %v141, 64
    %v169 = vpop.permute.xlu0 %168
    %171 = vrot.lane.b32.xlu0 %v141, 56
    %v172 = vpop.permute.xlu0 %171
    %174 = vrot.lane.b32.xlu0 %v141, 48
    %v175 = vpop.permute.xlu0 %174
    %177 = vrot.lane.b32.xlu0 %v141, 40
    %v178 = vpop.permute.xlu0 %177
    %v180 = vrot.slane %v151, 4
    %vm181 = vcmask 1047556
    %v182 = vsel %vm181, %v180, %v141
    %v183 = vrot.slane %v141, 4
    %v184 = vsel %vm181, %v151, %v183
    %v186 = vunpack.c.l.s4 1983009808
    %v187 = vunpack.c.0.s8 %v186
    %v188 = vperm.slane %v182, %v187
    %v190 = vunpack.c.l.s4 1983009808
    %v191 = vunpack.c.0.s8 %v190
    %v192 = vperm.slane %v184, %v191
    %v193 = vrot.slane %v154, 4
    %v194 = vsel %vm181, %v193, %v148
    %v195 = vrot.slane %v148, 4
    %v196 = vsel %vm181, %v154, %v195
    %v198 = vunpack.c.l.s4 1983009808
    %v199 = vunpack.c.0.s8 %v198
    %v200 = vperm.slane %v194, %v199
    %v202 = vunpack.c.l.s4 1983009808
    %v203 = vunpack.c.0.s8 %v202
    %v204 = vperm.slane %v196, %v203
    %v205 = vrot.slane %v163, 4
    %v206 = vsel %vm181, %v205, %v157
    %v207 = vrot.slane %v157, 4
    %v208 = vsel %vm181, %v163, %v207
    %v210 = vunpack.c.l.s4 1983009808
    %v211 = vunpack.c.0.s8 %v210
    %v212 = vperm.slane %v206, %v211
    %v214 = vunpack.c.l.s4 1983009808
    %v215 = vunpack.c.0.s8 %v214
    %v216 = vperm.slane %v208, %v215
    %v217 = vrot.slane %v166, 4
    %v218 = vsel %vm181, %v217, %v160
    %v219 = vrot.slane %v160, 4
    %v220 = vsel %vm181, %v166, %v219
    %v222 = vunpack.c.l.s4 1983009808
    %v223 = vunpack.c.0.s8 %v222
    %v224 = vperm.slane %v218, %v223
    %v226 = vunpack.c.l.s4 1983009808
    %v227 = vunpack.c.0.s8 %v226
    %v228 = vperm.slane %v220, %v227
    %v229 = vrot.slane %v200, 4
    %v230 = vsel %vm181, %v229, %v188
    %v231 = vrot.slane %v188, 4
    %v232 = vsel %vm181, %v200, %v231
    %v234 = vunpack.c.l.s4 1934713408
    %v235 = vunpack.c.0.s8 %v234
    %v236 = vperm.slane %v230, %v235
    %v238 = vunpack.c.l.s4 1934713408
    %v239 = vunpack.c.0.s8 %v238
    %v240 = vperm.slane %v232, %v239
    %v241 = vrot.slane %v204, 4
    %v242 = vsel %vm181, %v241, %v192
    %v243 = vrot.slane %v192, 4
    %v244 = vsel %vm181, %v204, %v243
    %v246 = vunpack.c.l.s4 1934713408
    %v247 = vunpack.c.0.s8 %v246
    %v248 = vperm.slane %v242, %v247
    %v250 = vunpack.c.l.s4 1934713408
    %v251 = vunpack.c.0.s8 %v250
    %v252 = vperm.slane %v244, %v251
    %v253 = vrot.slane %v224, 4
    %v254 = vsel %vm181, %v253, %v212
    %v255 = vrot.slane %v212, 4
    %v256 = vsel %vm181, %v224, %v255
    %v258 = vunpack.c.l.s4 1934713408
    %v259 = vunpack.c.0.s8 %v258
    %v260 = vperm.slane %v254, %v259
    %v262 = vunpack.c.l.s4 1934713408
    %v263 = vunpack.c.0.s8 %v262
    %v264 = vperm.slane %v256, %v263
    %v265 = vrot.slane %v228, 4
    %v266 = vsel %vm181, %v265, %v216
    %v267 = vrot.slane %v216, 4
    %v268 = vsel %vm181, %v228, %v267
    %v270 = vunpack.c.l.s4 1934713408
    %v271 = vunpack.c.0.s8 %v270
    %v272 = vperm.slane %v266, %v271
    %v274 = vunpack.c.l.s4 1934713408
    %v275 = vunpack.c.0.s8 %v274
    %v276 = vperm.slane %v268, %v275
    %v277 = vrot.slane %v260, 4
    %v278 = vsel %vm181, %v277, %v236
    %v279 = vrot.slane %v236, 4
    %v280 = vsel %vm181, %v260, %v279
    %v281 = vrot.slane %v264, 4
    %v282 = vsel %vm181, %v281, %v240
    %v283 = vrot.slane %v240, 4
    %v284 = vsel %vm181, %v264, %v283
    %v285 = vrot.slane %v272, 4
    %v286 = vsel %vm181, %v285, %v248
    %v287 = vrot.slane %v248, 4
    %v288 = vsel %vm181, %v272, %v287
    %v289 = vrot.slane %v276, 4
    %v290 = vsel %vm181, %v289, %v252
    %v291 = vrot.slane %v252, 4
    %v292 = vsel %vm181, %v276, %v291
    %v293 = vrot.slane %v175, 4
    %v294 = vsel %vm181, %v293, %v169
    %v295 = vrot.slane %v169, 4
    %v296 = vsel %vm181, %v175, %v295
    %v298 = vunpack.c.l.s4 1983009808
    %v299 = vunpack.c.0.s8 %v298
    %v300 = vperm.slane %v294, %v299
    %v302 = vunpack.c.l.s4 1983009808
    %v303 = vunpack.c.0.s8 %v302
    %v304 = vperm.slane %v296, %v303
    %v305 = vrot.slane %v178, 4
    %v306 = vsel %vm181, %v305, %v172
    %v307 = vrot.slane %v172, 4
    %v308 = vsel %vm181, %v178, %v307
    %v310 = vunpack.c.l.s4 1983009808
    %v311 = vunpack.c.0.s8 %v310
    %v312 = vperm.slane %v306, %v311
    %v314 = vunpack.c.l.s4 1983009808
    %v315 = vunpack.c.0.s8 %v314
    %v316 = vperm.slane %v308, %v315
    %v317 = vrot.slane %v312, 4
    %v318 = vsel %vm181, %v317, %v300
    %v319 = vrot.slane %v300, 4
    %v320 = vsel %vm181, %v312, %v319
    %v322 = vunpack.c.l.s4 1934713408
    %v323 = vunpack.c.0.s8 %v322
    %v324 = vperm.slane %v318, %v323
    %v326 = vunpack.c.l.s4 1934713408
    %v327 = vunpack.c.0.s8 %v326
    %v328 = vperm.slane %v320, %v327
    %v329 = vrot.slane %v316, 4
    %v330 = vsel %vm181, %v329, %v304
    %v331 = vrot.slane %v304, 4
    %v332 = vsel %vm181, %v316, %v331
    %v334 = vunpack.c.l.s4 1934713408
    %v335 = vunpack.c.0.s8 %v334
    %v336 = vperm.slane %v330, %v335
    %v338 = vunpack.c.l.s4 1934713408
    %v339 = vunpack.c.0.s8 %v338
    %v340 = vperm.slane %v332, %v339
    %v341 = vrot.slane %v324, 4
    %v342 = vsel %vm181, 0.0, %v341
    %v343 = vrot.slane %v328, 4
    %v344 = vsel %vm181, 0.0, %v343
    %v345 = vrot.slane %v336, 4
    %v346 = vsel %vm181, 0.0, %v345
    %v347 = vrot.slane %v340, 4
    %v348 = vsel %vm181, 0.0, %v347
    %v349 = vrot.slane %v282, 4
    %v350 = vsel %vm181, %v349, %v278
    %v351 = vrot.slane %v278, 4
    %v352 = vsel %vm181, %v282, %v351
    %v354 = vunpack.c.l.s4 1983009808
    %v355 = vunpack.c.0.s8 %v354
    %v356 = vperm.slane %v350, %v355
    %v358 = vunpack.c.l.s4 1983009808
    %v359 = vunpack.c.0.s8 %v358
    %v360 = vperm.slane %v352, %v359
    %v361 = vrot.slane %v284, 4
    %v362 = vsel %vm181, %v361, %v280
    %v363 = vrot.slane %v280, 4
    %v364 = vsel %vm181, %v284, %v363
    %v366 = vunpack.c.l.s4 1983009808
    %v367 = vunpack.c.0.s8 %v366
    %v368 = vperm.slane %v362, %v367
    %v370 = vunpack.c.l.s4 1983009808
    %v371 = vunpack.c.0.s8 %v370
    %v372 = vperm.slane %v364, %v371
    %v373 = vrot.slane %v290, 4
    %v374 = vsel %vm181, %v373, %v286
    %v375 = vrot.slane %v286, 4
    %v376 = vsel %vm181, %v290, %v375
    %v378 = vunpack.c.l.s4 1983009808
    %v379 = vunpack.c.0.s8 %v378
    %v380 = vperm.slane %v374, %v379
    %v382 = vunpack.c.l.s4 1983009808
    %v383 = vunpack.c.0.s8 %v382
    %v384 = vperm.slane %v376, %v383
    %v385 = vrot.slane %v292, 4
    %v386 = vsel %vm181, %v385, %v288
    %v387 = vrot.slane %v288, 4
    %v388 = vsel %vm181, %v292, %v387
    %v390 = vunpack.c.l.s4 1983009808
    %v391 = vunpack.c.0.s8 %v390
    %v392 = vperm.slane %v386, %v391
    %v394 = vunpack.c.l.s4 1983009808
    %v395 = vunpack.c.0.s8 %v394
    %v396 = vperm.slane %v388, %v395
    %v397 = vrot.slane %v368, 4
    %v398 = vsel %vm181, %v397, %v356
    %v399 = vrot.slane %v356, 4
    %v400 = vsel %vm181, %v368, %v399
    %v402 = vunpack.c.l.s4 1934713408
    %v403 = vunpack.c.0.s8 %v402
    %v404 = vperm.slane %v398, %v403
    %v406 = vunpack.c.l.s4 1934713408
    %v407 = vunpack.c.0.s8 %v406
    %v408 = vperm.slane %v400, %v407
    %v409 = vrot.slane %v372, 4
    %v410 = vsel %vm181, %v409, %v360
    %v411 = vrot.slane %v360, 4
    %v412 = vsel %vm181, %v372, %v411
    %v414 = vunpack.c.l.s4 1934713408
    %v415 = vunpack.c.0.s8 %v414
    %v416 = vperm.slane %v410, %v415
    %v418 = vunpack.c.l.s4 1934713408
    %v419 = vunpack.c.0.s8 %v418
    %v420 = vperm.slane %v412, %v419
    %v421 = vrot.slane %v392, 4
    %v422 = vsel %vm181, %v421, %v380
    %v423 = vrot.slane %v380, 4
    %v424 = vsel %vm181, %v392, %v423
    %v426 = vunpack.c.l.s4 1934713408
    %v427 = vunpack.c.0.s8 %v426
    %v428 = vperm.slane %v422, %v427
    %v430 = vunpack.c.l.s4 1934713408
    %v431 = vunpack.c.0.s8 %v430
    %v432 = vperm.slane %v424, %v431
    %v433 = vrot.slane %v396, 4
    %v434 = vsel %vm181, %v433, %v384
    %v435 = vrot.slane %v384, 4
    %v436 = vsel %vm181, %v396, %v435
    %v438 = vunpack.c.l.s4 1934713408
    %v439 = vunpack.c.0.s8 %v438
    %v440 = vperm.slane %v434, %v439
    %v442 = vunpack.c.l.s4 1934713408
    %v443 = vunpack.c.0.s8 %v442
    %v444 = vperm.slane %v436, %v443
    %v445 = vrot.slane %v428, 4
    %v446 = vsel %vm181, %v445, %v404
    %v447 = vrot.slane %v404, 4
    %v448 = vsel %vm181, %v428, %v447
    %v449 = vrot.slane %v432, 4
    %v450 = vsel %vm181, %v449, %v408
    %v451 = vrot.slane %v408, 4
    %v452 = vsel %vm181, %v432, %v451
    %v453 = vrot.slane %v440, 4
    %v454 = vsel %vm181, %v453, %v416
    %v455 = vrot.slane %v416, 4
    %v456 = vsel %vm181, %v440, %v455
    %v457 = vrot.slane %v444, 4
    %v458 = vsel %vm181, %v457, %v420
    %v459 = vrot.slane %v420, 4
    %v460 = vsel %vm181, %v444, %v459
    %v461 = vsel %vm181, %v343, %v324
    %v463 = vunpack.c.l.s4 1983009808
    %v464 = vunpack.c.0.s8 %v463
    %v465 = vperm.slane %v461, %v464
    %v466 = vrot.slane %v344, 4
    %v467 = vsel %vm181, %v466, %v342
    %v469 = vunpack.c.l.s4 1983009808
    %v470 = vunpack.c.0.s8 %v469
    %v471 = vperm.slane %v467, %v470
    %v472 = vsel %vm181, %v347, %v336
    %v474 = vunpack.c.l.s4 1983009808
    %v475 = vunpack.c.0.s8 %v474
    %v476 = vperm.slane %v472, %v475
    %v477 = vrot.slane %v348, 4
    %v478 = vsel %vm181, %v477, %v346
    %v480 = vunpack.c.l.s4 1983009808
    %v481 = vunpack.c.0.s8 %v480
    %v482 = vperm.slane %v478, %v481
    %v483 = vrot.slane %v471, 4
    %v484 = vsel %vm181, %v483, %v465
    %v485 = vrot.slane %v465, 4
    %v486 = vsel %vm181, %v471, %v485
    %v488 = vunpack.c.l.s4 1934713408
    %v489 = vunpack.c.0.s8 %v488
    %v490 = vperm.slane %v484, %v489
    %v492 = vunpack.c.l.s4 1934713408
    %v493 = vunpack.c.0.s8 %v492
    %v494 = vperm.slane %v486, %v493
    %v495 = vrot.slane %v482, 4
    %v496 = vsel %vm181, %v495, %v476
    %v497 = vrot.slane %v476, 4
    %v498 = vsel %vm181, %v482, %v497
    %v500 = vunpack.c.l.s4 1934713408
    %v501 = vunpack.c.0.s8 %v500
    %v502 = vperm.slane %v496, %v501
    %v504 = vunpack.c.l.s4 1934713408
    %v505 = vunpack.c.0.s8 %v504
    %v506 = vperm.slane %v498, %v505
    %v507 = vrot.slane %v502, 4
    %v508 = vsel %vm181, %v507, %v490
    %v509 = vrot.slane %v490, 4
    %v510 = vsel %vm181, %v502, %v509
    %v511 = vrot.slane %v506, 4
    %v512 = vsel %vm181, %v511, %v494
    %v513 = vrot.slane %v494, 4
    %v514 = vsel %vm181, %v506, %v513
    %s515 = sld [smem:[#allocation2]]
    %v516 = vld [vmem:[#allocation6] sm:$0xff]
    %s517 = smul.u32 %s515, 32
    %s518 = scalar_lea.vmem [#allocation9], %s517
    %v519 = vld [vmem:[%s518] sm:$0xff]
    %v520 = vld [vmem:[%s518 + $0x8] sm:$0xff]
    %v521 = vld [vmem:[%s518 + $0x10] sm:$0xff]
    %v522 = vld [vmem:[%s518 + $0x18] sm:$0xff]
    %s523 = scalar_lea.vmem %s5, %s515
    %v524 = vld [vmem:[%s523] sm:$0x1]
    %v526 = vperm.slane %v524, 0
    %v529 = vsel %vm116, %v516, 0
    %531 = vmatpush.msra.mxu0 0.0
    %532 = vmatpush.msra.mxu0 0.0
    %533 = vmatpush.msra.mxu0 0.0
    %534 = vmatpush.msra.mxu0 0.0
    %535 = vmatpush.msra.mxu0 0.0
    %536 = vmatpush.msra.mxu0 0.0
    %537 = vmatpush.msra.mxu0 0.0
    %538 = vmatpush.msra.mxu0 0.0
    %539 = vmatpush.msra.mxu0 0.0
    %540 = vmatpush.msra.mxu0 0.0
    %541 = vmatpush.msra.mxu0 0.0
    %542 = vmatpush.msra.mxu0 0.0
    %543 = vmatpush.msra.mxu0 %v522
    %544 = vmatpush.msra.mxu0 %v521
    %545 = vmatpush.msra.mxu0 %v520
    %546 = vmatpush.msra.mxu0 %v519
    %547 = vmatmul.f32.gmra.mxu0 %v529
    %v548 = vpop.f32.mrf.mxu0
    %v549 = vadd.f32 %v526, %v548
    %550 = vdwg.mxu0
    %552 = vrot.lane.b32.xlu0 %v549, 120
    %v553 = vpop.permute.xlu0 %552
    %555 = vrot.lane.b32.xlu0 %v549, 112
    %v556 = vpop.permute.xlu0 %555
    %558 = vrot.lane.b32.xlu0 %v549, 104
    %v559 = vpop.permute.xlu0 %558
    %561 = vrot.lane.b32.xlu0 %v549, 96
    %v562 = vpop.permute.xlu0 %561
    %564 = vrot.lane.b32.xlu0 %v549, 88
    %v565 = vpop.permute.xlu0 %564
    %567 = vrot.lane.b32.xlu0 %v549, 80
    %v568 = vpop.permute.xlu0 %567
    %570 = vrot.lane.b32.xlu0 %v549, 72
    %v571 = vpop.permute.xlu0 %570
    %v573 = vrot.slane %v556, 4
    %v574 = vsel %vm181, %v573, %v549
    %v575 = vrot.slane %v549, 4
    %v576 = vsel %vm181, %v556, %v575
    %v578 = vunpack.c.l.s4 1983009808
    %v579 = vunpack.c.0.s8 %v578
    %v580 = vperm.slane %v574, %v579
    %v582 = vunpack.c.l.s4 1983009808
    %v583 = vunpack.c.0.s8 %v582
    %v584 = vperm.slane %v576, %v583
    %v585 = vrot.slane %v559, 4
    %v586 = vsel %vm181, %v585, %v553
    %v587 = vrot.slane %v553, 4
    %v588 = vsel %vm181, %v559, %v587
    %v590 = vunpack.c.l.s4 1983009808
    %v591 = vunpack.c.0.s8 %v590
    %v592 = vperm.slane %v586, %v591
    %v594 = vunpack.c.l.s4 1983009808
    %v595 = vunpack.c.0.s8 %v594
    %v596 = vperm.slane %v588, %v595
    %v597 = vrot.slane %v568, 4
    %v598 = vsel %vm181, %v597, %v562
    %v599 = vrot.slane %v562, 4
    %v600 = vsel %vm181, %v568, %v599
    %v602 = vunpack.c.l.s4 1983009808
    %v603 = vunpack.c.0.s8 %v602
    %v604 = vperm.slane %v598, %v603
    %v606 = vunpack.c.l.s4 1983009808
    %v607 = vunpack.c.0.s8 %v606
    %v608 = vperm.slane %v600, %v607
    %v609 = vrot.slane %v571, 4
    %v610 = vsel %vm181, %v609, %v565
    %v611 = vrot.slane %v565, 4
    %v612 = vsel %vm181, %v571, %v611
    %v614 = vunpack.c.l.s4 1983009808
    %v615 = vunpack.c.0.s8 %v614
    %v616 = vperm.slane %v610, %v615
    %v618 = vunpack.c.l.s4 1983009808
    %v619 = vunpack.c.0.s8 %v618
    %v620 = vperm.slane %v612, %v619
    %v621 = vrot.slane %v592, 4
    %v622 = vsel %vm181, %v621, %v580
    %v623 = vrot.slane %v580, 4
    %v624 = vsel %vm181, %v592, %v623
    %v626 = vunpack.c.l.s4 1934713408
    %v627 = vunpack.c.0.s8 %v626
    %v628 = vperm.slane %v622, %v627
    %v630 = vunpack.c.l.s4 1934713408
    %v631 = vunpack.c.0.s8 %v630
    %v632 = vperm.slane %v624, %v631
    %v633 = vrot.slane %v596, 4
    %v634 = vsel %vm181, %v633, %v584
    %v635 = vrot.slane %v584, 4
    %v636 = vsel %vm181, %v596, %v635
    %v638 = vunpack.c.l.s4 1934713408
    %v639 = vunpack.c.0.s8 %v638
    %v640 = vperm.slane %v634, %v639
    %v642 = vunpack.c.l.s4 1934713408
    %v643 = vunpack.c.0.s8 %v642
    %v644 = vperm.slane %v636, %v643
    %v645 = vrot.slane %v616, 4
    %v646 = vsel %vm181, %v645, %v604
    %v647 = vrot.slane %v604, 4
    %v648 = vsel %vm181, %v616, %v647
    %v650 = vunpack.c.l.s4 1934713408
    %v651 = vunpack.c.0.s8 %v650
    %v652 = vperm.slane %v646, %v651
    %v654 = vunpack.c.l.s4 1934713408
    %v655 = vunpack.c.0.s8 %v654
    %v656 = vperm.slane %v648, %v655
    %v657 = vrot.slane %v620, 4
    %v658 = vsel %vm181, %v657, %v608
    %v659 = vrot.slane %v608, 4
    %v660 = vsel %vm181, %v620, %v659
    %v662 = vunpack.c.l.s4 1934713408
    %v663 = vunpack.c.0.s8 %v662
    %v664 = vperm.slane %v658, %v663
    %v666 = vunpack.c.l.s4 1934713408
    %v667 = vunpack.c.0.s8 %v666
    %v668 = vperm.slane %v660, %v667
    %v669 = vrot.slane %v652, 4
    %v670 = vsel %vm181, %v669, %v628
    %v671 = vrot.slane %v628, 4
    %v672 = vsel %vm181, %v652, %v671
    %v673 = vrot.slane %v656, 4
    %v674 = vsel %vm181, %v673, %v632
    %v675 = vrot.slane %v632, 4
    %v676 = vsel %vm181, %v656, %v675
    %v677 = vrot.slane %v664, 4
    %v678 = vsel %vm181, %v677, %v640
    %v679 = vrot.slane %v640, 4
    %v680 = vsel %vm181, %v664, %v679
    %v681 = vrot.slane %v668, 4
    %v682 = vsel %vm181, %v681, %v644
    %v683 = vrot.slane %v644, 4
    %v684 = vsel %vm181, %v668, %v683
    %v685 = vrot.slane %v674, 4
    %v686 = vsel %vm181, %v685, %v670
    %v687 = vrot.slane %v670, 4
    %v688 = vsel %vm181, %v674, %v687
    %v690 = vunpack.c.l.s4 1983009808
    %v691 = vunpack.c.0.s8 %v690
    %v692 = vperm.slane %v686, %v691
    %v694 = vunpack.c.l.s4 1983009808
    %v695 = vunpack.c.0.s8 %v694
    %v696 = vperm.slane %v688, %v695
    %v697 = vrot.slane %v676, 4
    %v698 = vsel %vm181, %v697, %v672
    %v699 = vrot.slane %v672, 4
    %v700 = vsel %vm181, %v676, %v699
    %v702 = vunpack.c.l.s4 1983009808
    %v703 = vunpack.c.0.s8 %v702
    %v704 = vperm.slane %v698, %v703
    %v706 = vunpack.c.l.s4 1983009808
    %v707 = vunpack.c.0.s8 %v706
    %v708 = vperm.slane %v700, %v707
    %v709 = vrot.slane %v682, 4
    %v710 = vsel %vm181, %v709, %v678
    %v711 = vrot.slane %v678, 4
    %v712 = vsel %vm181, %v682, %v711
    %v714 = vunpack.c.l.s4 1983009808
    %v715 = vunpack.c.0.s8 %v714
    %v716 = vperm.slane %v710, %v715
    %v718 = vunpack.c.l.s4 1983009808
    %v719 = vunpack.c.0.s8 %v718
    %v720 = vperm.slane %v712, %v719
    %v721 = vrot.slane %v684, 4
    %v722 = vsel %vm181, %v721, %v680
    %v723 = vrot.slane %v680, 4
    %v724 = vsel %vm181, %v684, %v723
    %v726 = vunpack.c.l.s4 1983009808
    %v727 = vunpack.c.0.s8 %v726
    %v728 = vperm.slane %v722, %v727
    %v730 = vunpack.c.l.s4 1983009808
    %v731 = vunpack.c.0.s8 %v730
    %v732 = vperm.slane %v724, %v731
    %v733 = vrot.slane %v704, 4
    %v734 = vsel %vm181, %v733, %v692
    %v735 = vrot.slane %v692, 4
    %v736 = vsel %vm181, %v704, %v735
    %v738 = vunpack.c.l.s4 1934713408
    %v739 = vunpack.c.0.s8 %v738
    %v740 = vperm.slane %v734, %v739
    %v742 = vunpack.c.l.s4 1934713408
    %v743 = vunpack.c.0.s8 %v742
    %v744 = vperm.slane %v736, %v743
    %v745 = vrot.slane %v708, 4
    %v746 = vsel %vm181, %v745, %v696
    %v747 = vrot.slane %v696, 4
    %v748 = vsel %vm181, %v708, %v747
    %v750 = vunpack.c.l.s4 1934713408
    %v751 = vunpack.c.0.s8 %v750
    %v752 = vperm.slane %v746, %v751
    %v754 = vunpack.c.l.s4 1934713408
    %v755 = vunpack.c.0.s8 %v754
    %v756 = vperm.slane %v748, %v755
    %v757 = vrot.slane %v728, 4
    %v758 = vsel %vm181, %v757, %v716
    %v759 = vrot.slane %v716, 4
    %v760 = vsel %vm181, %v728, %v759
    %v762 = vunpack.c.l.s4 1934713408
    %v763 = vunpack.c.0.s8 %v762
    %v764 = vperm.slane %v758, %v763
    %v766 = vunpack.c.l.s4 1934713408
    %v767 = vunpack.c.0.s8 %v766
    %v768 = vperm.slane %v760, %v767
    %v769 = vrot.slane %v732, 4
    %v770 = vsel %vm181, %v769, %v720
    %v771 = vrot.slane %v720, 4
    %v772 = vsel %vm181, %v732, %v771
    %v774 = vunpack.c.l.s4 1934713408
    %v775 = vunpack.c.0.s8 %v774
    %v776 = vperm.slane %v770, %v775
    %v778 = vunpack.c.l.s4 1934713408
    %v779 = vunpack.c.0.s8 %v778
    %v780 = vperm.slane %v772, %v779
    %v781 = vrot.slane %v764, 4
    %v782 = vsel %vm181, %v781, %v740
    %v783 = vrot.slane %v740, 4
    %v784 = vsel %vm181, %v764, %v783
    %v785 = vrot.slane %v768, 4
    %v786 = vsel %vm181, %v785, %v744
    %v787 = vrot.slane %v744, 4
    %v788 = vsel %vm181, %v768, %v787
    %v789 = vrot.slane %v776, 4
    %v790 = vsel %vm181, %v789, %v752
    %v791 = vrot.slane %v752, 4
    %v792 = vsel %vm181, %v776, %v791
    %v793 = vrot.slane %v780, 4
    %v794 = vsel %vm181, %v793, %v756
    %v795 = vrot.slane %v756, 4
    %v796 = vsel %vm181, %v780, %v795
    %vm797 = vcmask 64512
    %v799 = vsel %vm797, %v446, 0
    %v802 = vsel %vm797, %v454, 0
    %804 = vmatpush.xpose.msra.mxu0 0.0
    %805 = vmatpush.xpose.msra.mxu0 0.0
    %806 = vmatpush.xpose.msra.mxu0 0.0
    %807 = vmatpush.xpose.msra.mxu0 0.0
    %808 = vmatpush.xpose.msra.mxu0 0.0
    %809 = vmatpush.xpose.msra.mxu0 0.0
    %810 = vmatpush.xpose.msra.mxu0 0.0
    %811 = vmatpush.xpose.msra.mxu0 0.0
    %812 = vmatpush.xpose.msra.mxu0 0.0
    %813 = vmatpush.xpose.msra.mxu0 0.0
    %814 = vmatpush.xpose.msra.mxu0 0.0
    %815 = vmatpush.xpose.msra.mxu0 0.0
    %816 = vmatpush.xpose.msra.mxu0 0.0
    %817 = vmatpush.xpose.msra.mxu0 0.0
    %818 = vmatpush.xpose.msra.mxu0 0.0
    %819 = vmatpush.xpose.msra.mxu0 %v802
    %820 = vmatmul.f32.gmra.mxu0 %v799
    %v821 = vpop.f32.mrf.mxu0
    %v822 = vadd.f32 0.0, %v821
    %823 = vdwg.mxu0
    %v825 = vsel %vm797, %v448, 0
    %v828 = vsel %vm797, %v456, 0
    %830 = vmatpush.xpose.msra.mxu0 0.0
    %831 = vmatpush.xpose.msra.mxu0 0.0
    %832 = vmatpush.xpose.msra.mxu0 0.0
    %833 = vmatpush.xpose.msra.mxu0 0.0
    %834 = vmatpush.xpose.msra.mxu0 0.0
    %835 = vmatpush.xpose.msra.mxu0 0.0
    %836 = vmatpush.xpose.msra.mxu0 0.0
    %837 = vmatpush.xpose.msra.mxu0 0.0
    %838 = vmatpush.xpose.msra.mxu0 0.0
    %839 = vmatpush.xpose.msra.mxu0 0.0
    %840 = vmatpush.xpose.msra.mxu0 0.0
    %841 = vmatpush.xpose.msra.mxu0 0.0
    %842 = vmatpush.xpose.msra.mxu0 0.0
    %843 = vmatpush.xpose.msra.mxu0 0.0
    %844 = vmatpush.xpose.msra.mxu0 0.0
    %845 = vmatpush.xpose.msra.mxu0 %v828
    %846 = vmatmul.f32.gmra.mxu0 %v825
    %v847 = vpop.f32.mrf.mxu0
    %v848 = vadd.f32 0.0, %v847
    %849 = vdwg.mxu0
    %v851 = vsel %vm797, %v450, 0
    %v854 = vsel %vm797, %v458, 0
    %856 = vmatpush.xpose.msra.mxu0 0.0
    %857 = vmatpush.xpose.msra.mxu0 0.0
    %858 = vmatpush.xpose.msra.mxu0 0.0
    %859 = vmatpush.xpose.msra.mxu0 0.0
    %860 = vmatpush.xpose.msra.mxu0 0.0
    %861 = vmatpush.xpose.msra.mxu0 0.0
    %862 = vmatpush.xpose.msra.mxu0 0.0
    %863 = vmatpush.xpose.msra.mxu0 0.0
    %864 = vmatpush.xpose.msra.mxu0 0.0
    %865 = vmatpush.xpose.msra.mxu0 0.0
    %866 = vmatpush.xpose.msra.mxu0 0.0
    %867 = vmatpush.xpose.msra.mxu0 0.0
    %868 = vmatpush.xpose.msra.mxu0 0.0
    %869 = vmatpush.xpose.msra.mxu0 0.0
    %870 = vmatpush.xpose.msra.mxu0 0.0
    %871 = vmatpush.xpose.msra.mxu0 %v854
    %872 = vmatmul.f32.gmra.mxu0 %v851
    %v873 = vpop.f32.mrf.mxu0
    %v874 = vadd.f32 0.0, %v873
    %875 = vdwg.mxu0
    %v877 = vsel %vm797, %v452, 0
    %v880 = vsel %vm797, %v460, 0
    %882 = vmatpush.xpose.msra.mxu0 0.0
    %883 = vmatpush.xpose.msra.mxu0 0.0
    %884 = vmatpush.xpose.msra.mxu0 0.0
    %885 = vmatpush.xpose.msra.mxu0 0.0
    %886 = vmatpush.xpose.msra.mxu0 0.0
    %887 = vmatpush.xpose.msra.mxu0 0.0
    %888 = vmatpush.xpose.msra.mxu0 0.0
    %889 = vmatpush.xpose.msra.mxu0 0.0
    %890 = vmatpush.xpose.msra.mxu0 0.0
    %891 = vmatpush.xpose.msra.mxu0 0.0
    %892 = vmatpush.xpose.msra.mxu0 0.0
    %893 = vmatpush.xpose.msra.mxu0 0.0
    %894 = vmatpush.xpose.msra.mxu0 0.0
    %895 = vmatpush.xpose.msra.mxu0 0.0
    %896 = vmatpush.xpose.msra.mxu0 0.0
    %897 = vmatpush.xpose.msra.mxu0 %v880
    %898 = vmatmul.f32.gmra.mxu0 %v877
    %v899 = vpop.f32.mrf.mxu0
    %v900 = vadd.f32 0.0, %v899
    %901 = vdwg.mxu0
    %v903 = vsel %vm797, %v782, 0
    %v906 = vsel %vm797, %v790, 0
    %908 = vmatpush.xpose.msra.mxu0 0.0
    %909 = vmatpush.xpose.msra.mxu0 0.0
    %910 = vmatpush.xpose.msra.mxu0 0.0
    %911 = vmatpush.xpose.msra.mxu0 0.0
    %912 = vmatpush.xpose.msra.mxu0 0.0
    %913 = vmatpush.xpose.msra.mxu0 0.0
    %914 = vmatpush.xpose.msra.mxu0 0.0
    %915 = vmatpush.xpose.msra.mxu0 0.0
    %916 = vmatpush.xpose.msra.mxu0 0.0
    %917 = vmatpush.xpose.msra.mxu0 0.0
    %918 = vmatpush.xpose.msra.mxu0 0.0
    %919 = vmatpush.xpose.msra.mxu0 0.0
    %920 = vmatpush.xpose.msra.mxu0 0.0
    %921 = vmatpush.xpose.msra.mxu0 0.0
    %922 = vmatpush.xpose.msra.mxu0 0.0
    %923 = vmatpush.xpose.msra.mxu0 %v906
    %924 = vmatmul.f32.gmra.mxu0 %v903
    %v925 = vpop.f32.mrf.mxu0
    %v926 = vadd.f32 0.0, %v925
    %927 = vdwg.mxu0
    %v929 = vsel %vm797, %v784, 0
    %v932 = vsel %vm797, %v792, 0
    %934 = vmatpush.xpose.msra.mxu0 0.0
    %935 = vmatpush.xpose.msra.mxu0 0.0
    %936 = vmatpush.xpose.msra.mxu0 0.0
    %937 = vmatpush.xpose.msra.mxu0 0.0
    %938 = vmatpush.xpose.msra.mxu0 0.0
    %939 = vmatpush.xpose.msra.mxu0 0.0
    %940 = vmatpush.xpose.msra.mxu0 0.0
    %941 = vmatpush.xpose.msra.mxu0 0.0
    %942 = vmatpush.xpose.msra.mxu0 0.0
    %943 = vmatpush.xpose.msra.mxu0 0.0
    %944 = vmatpush.xpose.msra.mxu0 0.0
    %945 = vmatpush.xpose.msra.mxu0 0.0
    %946 = vmatpush.xpose.msra.mxu0 0.0
    %947 = vmatpush.xpose.msra.mxu0 0.0
    %948 = vmatpush.xpose.msra.mxu0 0.0
    %949 = vmatpush.xpose.msra.mxu0 %v932
    %950 = vmatmul.f32.gmra.mxu0 %v929
    %v951 = vpop.f32.mrf.mxu0
    %v952 = vadd.f32 0.0, %v951
    %953 = vdwg.mxu0
    %v955 = vsel %vm797, %v786, 0
    %v958 = vsel %vm797, %v794, 0
    %960 = vmatpush.xpose.msra.mxu0 0.0
    %961 = vmatpush.xpose.msra.mxu0 0.0
    %962 = vmatpush.xpose.msra.mxu0 0.0
    %963 = vmatpush.xpose.msra.mxu0 0.0
    %964 = vmatpush.xpose.msra.mxu0 0.0
    %965 = vmatpush.xpose.msra.mxu0 0.0
    %966 = vmatpush.xpose.msra.mxu0 0.0
    %967 = vmatpush.xpose.msra.mxu0 0.0
    %968 = vmatpush.xpose.msra.mxu0 0.0
    %969 = vmatpush.xpose.msra.mxu0 0.0
    %970 = vmatpush.xpose.msra.mxu0 0.0
    %971 = vmatpush.xpose.msra.mxu0 0.0
    %972 = vmatpush.xpose.msra.mxu0 0.0
    %973 = vmatpush.xpose.msra.mxu0 0.0
    %974 = vmatpush.xpose.msra.mxu0 0.0
    %975 = vmatpush.xpose.msra.mxu0 %v958
    %976 = vmatmul.f32.gmra.mxu0 %v955
    %v977 = vpop.f32.mrf.mxu0
    %v978 = vadd.f32 0.0, %v977
    %979 = vdwg.mxu0
    %v981 = vsel %vm797, %v788, 0
    %v984 = vsel %vm797, %v796, 0
    %986 = vmatpush.xpose.msra.mxu0 0.0
    %987 = vmatpush.xpose.msra.mxu0 0.0
    %988 = vmatpush.xpose.msra.mxu0 0.0
    %989 = vmatpush.xpose.msra.mxu0 0.0
    %990 = vmatpush.xpose.msra.mxu0 0.0
    %991 = vmatpush.xpose.msra.mxu0 0.0
    %992 = vmatpush.xpose.msra.mxu0 0.0
    %993 = vmatpush.xpose.msra.mxu0 0.0
    %994 = vmatpush.xpose.msra.mxu0 0.0
    %995 = vmatpush.xpose.msra.mxu0 0.0
    %996 = vmatpush.xpose.msra.mxu0 0.0
    %997 = vmatpush.xpose.msra.mxu0 0.0
    %998 = vmatpush.xpose.msra.mxu0 0.0
    %999 = vmatpush.xpose.msra.mxu0 0.0
    %1000 = vmatpush.xpose.msra.mxu0 0.0
    %1001 = vmatpush.xpose.msra.mxu0 %v984
    %1002 = vmatmul.f32.gmra.mxu0 %v981
    %v1003 = vpop.f32.mrf.mxu0
    %v1004 = vadd.f32 0.0, %v1003
    %1005 = vdwg.mxu0
    %v1006 = vsel %vm797, %v822, -inf
    %1007 = vmax.xlane.f32.xlu0 %v1006
    %v1008 = vpop.xlane.xlu0 %1007
    %v1009 = vsel %vm797, %v848, -inf
    %1010 = vmax.xlane.f32.xlu0 %v1009
    %v1011 = vpop.xlane.xlu0 %1010
    %v1012 = vsel %vm797, %v874, -inf
    %1013 = vmax.xlane.f32.xlu0 %v1012
    %v1014 = vpop.xlane.xlu0 %1013
    %v1015 = vsel %vm797, %v900, -inf
    %1016 = vmax.xlane.f32.xlu0 %v1015
    %v1017 = vpop.xlane.xlu0 %1016
    %v1018 = vsel %vm797, %v926, -inf
    %1019 = vmax.xlane.f32.xlu0 %v1018
    %v1020 = vpop.xlane.xlu0 %1019
    %v1021 = vsel %vm797, %v952, -inf
    %1022 = vmax.xlane.f32.xlu0 %v1021
    %v1023 = vpop.xlane.xlu0 %1022
    %v1024 = vsel %vm797, %v978, -inf
    %1025 = vmax.xlane.f32.xlu0 %v1024
    %v1026 = vpop.xlane.xlu0 %1025
    %v1027 = vsel %vm797, %v1004, -inf
    %1028 = vmax.xlane.f32.xlu0 %v1027
    %v1029 = vpop.xlane.xlu0 %1028
    %v1030 = vsub.f32 %v822, %v1008
    %v1031 = vsub.f32 %v848, %v1011
    %v1032 = vsub.f32 %v874, %v1014
    %v1033 = vsub.f32 %v900, %v1017
    %v1034 = vsub.f32 %v926, %v1020
    %v1035 = vsub.f32 %v952, %v1023
    %v1036 = vsub.f32 %v978, %v1026
    %v1037 = vsub.f32 %v1004, %v1029
    %v1038 = vmul.f32 %v1030, 1.442695
    %v1039 = vpow.pop %v1038
    %v1040 = vmul.f32 %v1031, 1.442695
    %v1041 = vpow.pop %v1040
    %v1042 = vmul.f32 %v1032, 1.442695
    %v1043 = vpow.pop %v1042
    %v1044 = vmul.f32 %v1033, 1.442695
    %v1045 = vpow.pop %v1044
    %v1046 = vmul.f32 %v1034, 1.442695
    %v1047 = vpow.pop %v1046
    %v1048 = vmul.f32 %v1035, 1.442695
    %v1049 = vpow.pop %v1048
    %v1050 = vmul.f32 %v1036, 1.442695
    %v1051 = vpow.pop %v1050
    %v1052 = vmul.f32 %v1037, 1.442695
    %v1053 = vpow.pop %v1052
    %v1054 = vsel %vm797, %v1039, 0.0
    %1055 = vadd.xlane.f32.xlu0 %v1054
    %v1056 = vpop.xlane.xlu0 %1055
    %v1057 = vsel %vm797, %v1041, 0.0
    %1058 = vadd.xlane.f32.xlu0 %v1057
    %v1059 = vpop.xlane.xlu0 %1058
    %v1060 = vsel %vm797, %v1043, 0.0
    %1061 = vadd.xlane.f32.xlu0 %v1060
    %v1062 = vpop.xlane.xlu0 %1061
    %v1063 = vsel %vm797, %v1045, 0.0
    %1064 = vadd.xlane.f32.xlu0 %v1063
    %v1065 = vpop.xlane.xlu0 %1064
    %v1066 = vsel %vm797, %v1047, 0.0
    %1067 = vadd.xlane.f32.xlu0 %v1066
    %v1068 = vpop.xlane.xlu0 %1067
    %v1069 = vsel %vm797, %v1049, 0.0
    %1070 = vadd.xlane.f32.xlu0 %v1069
    %v1071 = vpop.xlane.xlu0 %1070
    %v1072 = vsel %vm797, %v1051, 0.0
    %1073 = vadd.xlane.f32.xlu0 %v1072
    %v1074 = vpop.xlane.xlu0 %1073
    %v1075 = vsel %vm797, %v1053, 0.0
    %1076 = vadd.xlane.f32.xlu0 %v1075
    %v1077 = vpop.xlane.xlu0 %1076
    %v1078 = vrcp.pop %v1056
    %v1079 = vrcp.pop %v1059
    %v1080 = vrcp.pop %v1062
    %v1081 = vrcp.pop %v1065
    %v1082 = vrcp.pop %v1068
    %v1083 = vrcp.pop %v1071
    %v1084 = vrcp.pop %v1074
    %v1085 = vrcp.pop %v1077
    %v1086 = vmul.f32 %v1039, %v1078
    %v1087 = vmul.f32 %v1041, %v1079
    %v1088 = vmul.f32 %v1043, %v1080
    %v1089 = vmul.f32 %v1045, %v1081
    %v1090 = vmul.f32 %v1047, %v1082
    %v1091 = vmul.f32 %v1049, %v1083
    %v1092 = vmul.f32 %v1051, %v1084
    %v1093 = vmul.f32 %v1053, %v1085
    %v1094 = vmul.f32 %v1090, 0.1
    %v1095 = vmul.f32 %v1091, 0.1
    %v1096 = vmul.f32 %v1092, 0.1
    %v1097 = vmul.f32 %v1093, 0.1
    %v1098 = vmul.f32 %v1086, 0.9
    %v1099 = vmul.f32 %v1087, 0.9
    %v1100 = vmul.f32 %v1088, 0.9
    %v1101 = vmul.f32 %v1089, 0.9
    %v1102 = vadd.f32 %v1094, %v1098
    %v1103 = vadd.f32 %v1095, %v1099
    %v1104 = vadd.f32 %v1096, %v1100
    %v1105 = vadd.f32 %v1097, %v1101
    %v1106 = vmul.f32 %v1102, 0.5
    %v1107 = vmul.f32 %v1103, 0.5
    %v1108 = vmul.f32 %v1104, 0.5
    %v1109 = vmul.f32 %v1105, 0.5
    %v1111 = vsel %vm797, %v1106, 0
    %1113 = vmatpush.msra.mxu0 0.0
    %1114 = vmatpush.msra.mxu0 0.0
    %1115 = vmatpush.msra.mxu0 0.0
    %1116 = vmatpush.msra.mxu0 0.0
    %1117 = vmatpush.msra.mxu0 0.0
    %1118 = vmatpush.msra.mxu0 0.0
    %1119 = vmatpush.msra.mxu0 0.0
    %1120 = vmatpush.msra.mxu0 0.0
    %1121 = vmatpush.msra.mxu0 0.0
    %1122 = vmatpush.msra.mxu0 0.0
    %1123 = vmatpush.msra.mxu0 0.0
    %1124 = vmatpush.msra.mxu0 0.0
    %1125 = vmatpush.msra.mxu0 0.0
    %1126 = vmatpush.msra.mxu0 0.0
    %1127 = vmatpush.msra.mxu0 0.0
    %1128 = vmatpush.msra.mxu0 %v508
    %1129 = vmatmul.f32.gmra.mxu0 %v1111
    %v1130 = vpop.f32.mrf.mxu0
    %v1131 = vadd.f32 0.0, %v1130
    %1132 = vdwg.mxu0
    %v1134 = vsel %vm797, %v1107, 0
    %1136 = vmatpush.msra.mxu0 0.0
    %1137 = vmatpush.msra.mxu0 0.0
    %1138 = vmatpush.msra.mxu0 0.0
    %1139 = vmatpush.msra.mxu0 0.0
    %1140 = vmatpush.msra.mxu0 0.0
    %1141 = vmatpush.msra.mxu0 0.0
    %1142 = vmatpush.msra.mxu0 0.0
    %1143 = vmatpush.msra.mxu0 0.0
    %1144 = vmatpush.msra.mxu0 0.0
    %1145 = vmatpush.msra.mxu0 0.0
    %1146 = vmatpush.msra.mxu0 0.0
    %1147 = vmatpush.msra.mxu0 0.0
    %1148 = vmatpush.msra.mxu0 0.0
    %1149 = vmatpush.msra.mxu0 0.0
    %1150 = vmatpush.msra.mxu0 0.0
    %1151 = vmatpush.msra.mxu0 %v510
    %1152 = vmatmul.f32.gmra.mxu0 %v1134
    %v1153 = vpop.f32.mrf.mxu0
    %v1154 = vadd.f32 0.0, %v1153
    %1155 = vdwg.mxu0
    %v1157 = vsel %vm797, %v1108, 0
    %1159 = vmatpush.msra.mxu0 0.0
    %1160 = vmatpush.msra.mxu0 0.0
    %1161 = vmatpush.msra.mxu0 0.0
    %1162 = vmatpush.msra.mxu0 0.0
    %1163 = vmatpush.msra.mxu0 0.0
    %1164 = vmatpush.msra.mxu0 0.0
    %1165 = vmatpush.msra.mxu0 0.0
    %1166 = vmatpush.msra.mxu0 0.0
    %1167 = vmatpush.msra.mxu0 0.0
    %1168 = vmatpush.msra.mxu0 0.0
    %1169 = vmatpush.msra.mxu0 0.0
    %1170 = vmatpush.msra.mxu0 0.0
    %1171 = vmatpush.msra.mxu0 0.0
    %1172 = vmatpush.msra.mxu0 0.0
    %1173 = vmatpush.msra.mxu0 0.0
    %1174 = vmatpush.msra.mxu0 %v512
    %1175 = vmatmul.f32.gmra.mxu0 %v1157
    %v1176 = vpop.f32.mrf.mxu0
    %v1177 = vadd.f32 0.0, %v1176
    %1178 = vdwg.mxu0
    %v1180 = vsel %vm797, %v1109, 0
    %1182 = vmatpush.msra.mxu0 0.0
    %1183 = vmatpush.msra.mxu0 0.0
    %1184 = vmatpush.msra.mxu0 0.0
    %1185 = vmatpush.msra.mxu0 0.0
    %1186 = vmatpush.msra.mxu0 0.0
    %1187 = vmatpush.msra.mxu0 0.0
    %1188 = vmatpush.msra.mxu0 0.0
    %1189 = vmatpush.msra.mxu0 0.0
    %1190 = vmatpush.msra.mxu0 0.0
    %1191 = vmatpush.msra.mxu0 0.0
    %1192 = vmatpush.msra.mxu0 0.0
    %1193 = vmatpush.msra.mxu0 0.0
    %1194 = vmatpush.msra.mxu0 0.0
    %1195 = vmatpush.msra.mxu0 0.0
    %1196 = vmatpush.msra.mxu0 0.0
    %1197 = vmatpush.msra.mxu0 %v514
    %1198 = vmatmul.f32.gmra.mxu0 %v1180
    %v1199 = vpop.f32.mrf.mxu0
    %v1200 = vadd.f32 0.0, %v1199
    %1201 = vdwg.mxu0
    %v1202 = vld [vmem:[#allocation10] sm:$0xff]
    %v1203 = vld [vmem:[#allocation10 + $0x8] sm:$0xff]
    %v1204 = vld [vmem:[#allocation10 + $0x10] sm:$0xff]
    %v1205 = vld [vmem:[#allocation10 + $0x18] sm:$0xff]
    %v1207 = vsel %vm797, %v1131, 0
    %1209 = vmatpush.msra.mxu0 0.0
    %1210 = vmatpush.msra.mxu0 0.0
    %1211 = vmatpush.msra.mxu0 0.0
    %1212 = vmatpush.msra.mxu0 0.0
    %1213 = vmatpush.msra.mxu0 0.0
    %1214 = vmatpush.msra.mxu0 0.0
    %1215 = vmatpush.msra.mxu0 0.0
    %1216 = vmatpush.msra.mxu0 0.0
    %1217 = vmatpush.msra.mxu0 0.0
    %1218 = vmatpush.msra.mxu0 0.0
    %1219 = vmatpush.msra.mxu0 0.0
    %1220 = vmatpush.msra.mxu0 0.0
    %1221 = vmatpush.msra.mxu0 0.0
    %1222 = vmatpush.msra.mxu0 0.0
    %1223 = vmatpush.msra.mxu0 0.0
    %1224 = vmatpush.msra.mxu0 %v1202
    %1225 = vmatmul.f32.gmra.mxu0 %v1207
    %v1226 = vpop.f32.mrf.mxu0
    %v1227 = vadd.f32 0.0, %v1226
    %1228 = vdwg.mxu0
    %v1230 = vsel %vm797, %v1154, 0
    %1232 = vmatpush.msra.mxu0 0.0
    %1233 = vmatpush.msra.mxu0 0.0
    %1234 = vmatpush.msra.mxu0 0.0
    %1235 = vmatpush.msra.mxu0 0.0
    %1236 = vmatpush.msra.mxu0 0.0
    %1237 = vmatpush.msra.mxu0 0.0
    %1238 = vmatpush.msra.mxu0 0.0
    %1239 = vmatpush.msra.mxu0 0.0
    %1240 = vmatpush.msra.mxu0 0.0
    %1241 = vmatpush.msra.mxu0 0.0
    %1242 = vmatpush.msra.mxu0 0.0
    %1243 = vmatpush.msra.mxu0 0.0
    %1244 = vmatpush.msra.mxu0 0.0
    %1245 = vmatpush.msra.mxu0 0.0
    %1246 = vmatpush.msra.mxu0 0.0
    %1247 = vmatpush.msra.mxu0 %v1203
    %1248 = vmatmul.f32.gmra.mxu0 %v1230
    %v1249 = vpop.f32.mrf.mxu0
    %v1250 = vadd.f32 0.0, %v1249
    %1251 = vdwg.mxu0
    %v1253 = vsel %vm797, %v1177, 0
    %1255 = vmatpush.msra.mxu0 0.0
    %1256 = vmatpush.msra.mxu0 0.0
    %1257 = vmatpush.msra.mxu0 0.0
    %1258 = vmatpush.msra.mxu0 0.0
    %1259 = vmatpush.msra.mxu0 0.0
    %1260 = vmatpush.msra.mxu0 0.0
    %1261 = vmatpush.msra.mxu0 0.0
    %1262 = vmatpush.msra.mxu0 0.0
    %1263 = vmatpush.msra.mxu0 0.0
    %1264 = vmatpush.msra.mxu0 0.0
    %1265 = vmatpush.msra.mxu0 0.0
    %1266 = vmatpush.msra.mxu0 0.0
    %1267 = vmatpush.msra.mxu0 0.0
    %1268 = vmatpush.msra.mxu0 0.0
    %1269 = vmatpush.msra.mxu0 0.0
    %1270 = vmatpush.msra.mxu0 %v1204
    %1271 = vmatmul.f32.gmra.mxu0 %v1253
    %v1272 = vpop.f32.mrf.mxu0
    %v1273 = vadd.f32 0.0, %v1272
    %1274 = vdwg.mxu0
    %v1276 = vsel %vm797, %v1200, 0
    %1278 = vmatpush.msra.mxu0 0.0
    %1279 = vmatpush.msra.mxu0 0.0
    %1280 = vmatpush.msra.mxu0 0.0
    %1281 = vmatpush.msra.mxu0 0.0
    %1282 = vmatpush.msra.mxu0 0.0
    %1283 = vmatpush.msra.mxu0 0.0
    %1284 = vmatpush.msra.mxu0 0.0
    %1285 = vmatpush.msra.mxu0 0.0
    %1286 = vmatpush.msra.mxu0 0.0
    %1287 = vmatpush.msra.mxu0 0.0
    %1288 = vmatpush.msra.mxu0 0.0
    %1289 = vmatpush.msra.mxu0 0.0
    %1290 = vmatpush.msra.mxu0 0.0
    %1291 = vmatpush.msra.mxu0 0.0
    %1292 = vmatpush.msra.mxu0 0.0
    %1293 = vmatpush.msra.mxu0 %v1205
    %1294 = vmatmul.f32.gmra.mxu0 %v1276
    %v1295 = vpop.f32.mrf.mxu0
    %v1296 = vadd.f32 0.0, %v1295
    %1297 = vdwg.mxu0
    %v1298 = vsel %vm116, %v1227, 0.0
    %v1299 = vsel %vm116, %v1250, 0.0
    %v1300 = vadd.f32 %v1298, %v1299
    %v1301 = vsel %vm116, %v1273, 0.0
    %v1302 = vadd.f32 %v1300, %v1301
    %v1303 = vsel %vm116, %v1296, 0.0
    %v1304 = vadd.f32 %v1302, %v1303
    %v1305 = vld [vmem:[%s7] sm:$0x1]
    %v1307 = vperm.slane %v1305, 0
    %v1309 = vadd.f32 %v1304, %v1307
    %1310 = vst.msk [vmem:[#allocation12] sm:$0xff] %vm116, %v1309
    %1312 = vrot.lane.b32.xlu0 %v144, 120
    %v1313 = vpop.permute.xlu0 %1312
    %1315 = vrot.lane.b32.xlu0 %v144, 112
    %v1316 = vpop.permute.xlu0 %1315
    %1318 = vrot.lane.b32.xlu0 %v144, 104
    %v1319 = vpop.permute.xlu0 %1318
    %1321 = vrot.lane.b32.xlu0 %v144, 96
    %v1322 = vpop.permute.xlu0 %1321
    %1324 = vrot.lane.b32.xlu0 %v144, 88
    %v1325 = vpop.permute.xlu0 %1324
    %1327 = vrot.lane.b32.xlu0 %v144, 80
    %v1328 = vpop.permute.xlu0 %1327
    %1330 = vrot.lane.b32.xlu0 %v144, 72
    %v1331 = vpop.permute.xlu0 %1330
    %1333 = vrot.lane.b32.xlu0 %v144, 64
    %v1334 = vpop.permute.xlu0 %1333
    %1336 = vrot.lane.b32.xlu0 %v144, 56
    %v1337 = vpop.permute.xlu0 %1336
    %1339 = vrot.lane.b32.xlu0 %v144, 48
    %v1340 = vpop.permute.xlu0 %1339
    %1342 = vrot.lane.b32.xlu0 %v144, 40
    %v1343 = vpop.permute.xlu0 %1342
    %v1345 = vrot.slane %v1316, 4
    %v1346 = vsel %vm181, %v1345, %v144
    %v1347 = vrot.slane %v144, 4
    %v1348 = vsel %vm181, %v1316, %v1347
    %v1350 = vunpack.c.l.s4 1983009808
    %v1351 = vunpack.c.0.s8 %v1350
    %v1352 = vperm.slane %v1346, %v1351
    %v1354 = vunpack.c.l.s4 1983009808
    %v1355 = vunpack.c.0.s8 %v1354
    %v1356 = vperm.slane %v1348, %v1355
    %v1357 = vrot.slane %v1319, 4
    %v1358 = vsel %vm181, %v1357, %v1313
    %v1359 = vrot.slane %v1313, 4
    %v1360 = vsel %vm181, %v1319, %v1359
    %v1362 = vunpack.c.l.s4 1983009808
    %v1363 = vunpack.c.0.s8 %v1362
    %v1364 = vperm.slane %v1358, %v1363
    %v1366 = vunpack.c.l.s4 1983009808
    %v1367 = vunpack.c.0.s8 %v1366
    %v1368 = vperm.slane %v1360, %v1367
    %v1369 = vrot.slane %v1328, 4
    %v1370 = vsel %vm181, %v1369, %v1322
    %v1371 = vrot.slane %v1322, 4
    %v1372 = vsel %vm181, %v1328, %v1371
    %v1374 = vunpack.c.l.s4 1983009808
    %v1375 = vunpack.c.0.s8 %v1374
    %v1376 = vperm.slane %v1370, %v1375
    %v1378 = vunpack.c.l.s4 1983009808
    %v1379 = vunpack.c.0.s8 %v1378
    %v1380 = vperm.slane %v1372, %v1379
    %v1381 = vrot.slane %v1331, 4
    %v1382 = vsel %vm181, %v1381, %v1325
    %v1383 = vrot.slane %v1325, 4
    %v1384 = vsel %vm181, %v1331, %v1383
    %v1386 = vunpack.c.l.s4 1983009808
    %v1387 = vunpack.c.0.s8 %v1386
    %v1388 = vperm.slane %v1382, %v1387
    %v1390 = vunpack.c.l.s4 1983009808
    %v1391 = vunpack.c.0.s8 %v1390
    %v1392 = vperm.slane %v1384, %v1391
    %v1393 = vrot.slane %v1364, 4
    %v1394 = vsel %vm181, %v1393, %v1352
    %v1395 = vrot.slane %v1352, 4
    %v1396 = vsel %vm181, %v1364, %v1395
    %v1398 = vunpack.c.l.s4 1934713408
    %v1399 = vunpack.c.0.s8 %v1398
    %v1400 = vperm.slane %v1394, %v1399
    %v1402 = vunpack.c.l.s4 1934713408
    %v1403 = vunpack.c.0.s8 %v1402
    %v1404 = vperm.slane %v1396, %v1403
    %v1405 = vrot.slane %v1368, 4
    %v1406 = vsel %vm181, %v1405, %v1356
    %v1407 = vrot.slane %v1356, 4
    %v1408 = vsel %vm181, %v1368, %v1407
    %v1410 = vunpack.c.l.s4 1934713408
    %v1411 = vunpack.c.0.s8 %v1410
    %v1412 = vperm.slane %v1406, %v1411
    %v1414 = vunpack.c.l.s4 1934713408
    %v1415 = vunpack.c.0.s8 %v1414
    %v1416 = vperm.slane %v1408, %v1415
    %v1417 = vrot.slane %v1388, 4
    %v1418 = vsel %vm181, %v1417, %v1376
    %v1419 = vrot.slane %v1376, 4
    %v1420 = vsel %vm181, %v1388, %v1419
    %v1422 = vunpack.c.l.s4 1934713408
    %v1423 = vunpack.c.0.s8 %v1422
    %v1424 = vperm.slane %v1418, %v1423
    %v1426 = vunpack.c.l.s4 1934713408
    %v1427 = vunpack.c.0.s8 %v1426
    %v1428 = vperm.slane %v1420, %v1427
    %v1429 = vrot.slane %v1392, 4
    %v1430 = vsel %vm181, %v1429, %v1380
    %v1431 = vrot.slane %v1380, 4
    %v1432 = vsel %vm181, %v1392, %v1431
    %v1434 = vunpack.c.l.s4 1934713408
    %v1435 = vunpack.c.0.s8 %v1434
    %v1436 = vperm.slane %v1430, %v1435
    %v1438 = vunpack.c.l.s4 1934713408
    %v1439 = vunpack.c.0.s8 %v1438
    %v1440 = vperm.slane %v1432, %v1439
    %v1441 = vrot.slane %v1424, 4
    %v1442 = vsel %vm181, %v1441, %v1400
    %v1443 = vrot.slane %v1400, 4
    %v1444 = vsel %vm181, %v1424, %v1443
    %v1445 = vrot.slane %v1428, 4
    %v1446 = vsel %vm181, %v1445, %v1404
    %v1447 = vrot.slane %v1404, 4
    %v1448 = vsel %vm181, %v1428, %v1447
    %v1449 = vrot.slane %v1436, 4
    %v1450 = vsel %vm181, %v1449, %v1412
    %v1451 = vrot.slane %v1412, 4
    %v1452 = vsel %vm181, %v1436, %v1451
    %v1453 = vrot.slane %v1440, 4
    %v1454 = vsel %vm181, %v1453, %v1416
    %v1455 = vrot.slane %v1416, 4
    %v1456 = vsel %vm181, %v1440, %v1455
    %v1457 = vrot.slane %v1340, 4
    %v1458 = vsel %vm181, %v1457, %v1334
    %v1459 = vrot.slane %v1334, 4
    %v1460 = vsel %vm181, %v1340, %v1459
    %v1462 = vunpack.c.l.s4 1983009808
    %v1463 = vunpack.c.0.s8 %v1462
    %v1464 = vperm.slane %v1458, %v1463
    %v1466 = vunpack.c.l.s4 1983009808
    %v1467 = vunpack.c.0.s8 %v1466
    %v1468 = vperm.slane %v1460, %v1467
    %v1469 = vrot.slane %v1343, 4
    %v1470 = vsel %vm181, %v1469, %v1337
    %v1471 = vrot.slane %v1337, 4
    %v1472 = vsel %vm181, %v1343, %v1471
    %v1474 = vunpack.c.l.s4 1983009808
    %v1475 = vunpack.c.0.s8 %v1474
    %v1476 = vperm.slane %v1470, %v1475
    %v1478 = vunpack.c.l.s4 1983009808
    %v1479 = vunpack.c.0.s8 %v1478
    %v1480 = vperm.slane %v1472, %v1479
    %v1481 = vrot.slane %v1476, 4
    %v1482 = vsel %vm181, %v1481, %v1464
    %v1483 = vrot.slane %v1464, 4
    %v1484 = vsel %vm181, %v1476, %v1483
    %v1486 = vunpack.c.l.s4 1934713408
    %v1487 = vunpack.c.0.s8 %v1486
    %v1488 = vperm.slane %v1482, %v1487
    %v1490 = vunpack.c.l.s4 1934713408
    %v1491 = vunpack.c.0.s8 %v1490
    %v1492 = vperm.slane %v1484, %v1491
    %v1493 = vrot.slane %v1480, 4
    %v1494 = vsel %vm181, %v1493, %v1468
    %v1495 = vrot.slane %v1468, 4
    %v1496 = vsel %vm181, %v1480, %v1495
    %v1498 = vunpack.c.l.s4 1934713408
    %v1499 = vunpack.c.0.s8 %v1498
    %v1500 = vperm.slane %v1494, %v1499
    %v1502 = vunpack.c.l.s4 1934713408
    %v1503 = vunpack.c.0.s8 %v1502
    %v1504 = vperm.slane %v1496, %v1503
    %v1505 = vrot.slane %v1488, 4
    %v1506 = vsel %vm181, 0.0, %v1505
    %v1507 = vrot.slane %v1492, 4
    %v1508 = vsel %vm181, 0.0, %v1507
    %v1509 = vrot.slane %v1500, 4
    %v1510 = vsel %vm181, 0.0, %v1509
    %v1511 = vrot.slane %v1504, 4
    %v1512 = vsel %vm181, 0.0, %v1511
    %v1513 = vrot.slane %v1446, 4
    %v1514 = vsel %vm181, %v1513, %v1442
    %v1515 = vrot.slane %v1442, 4
    %v1516 = vsel %vm181, %v1446, %v1515
    %v1518 = vunpack.c.l.s4 1983009808
    %v1519 = vunpack.c.0.s8 %v1518
    %v1520 = vperm.slane %v1514, %v1519
    %v1522 = vunpack.c.l.s4 1983009808
    %v1523 = vunpack.c.0.s8 %v1522
    %v1524 = vperm.slane %v1516, %v1523
    %v1525 = vrot.slane %v1448, 4
    %v1526 = vsel %vm181, %v1525, %v1444
    %v1527 = vrot.slane %v1444, 4
    %v1528 = vsel %vm181, %v1448, %v1527
    %v1530 = vunpack.c.l.s4 1983009808
    %v1531 = vunpack.c.0.s8 %v1530
    %v1532 = vperm.slane %v1526, %v1531
    %v1534 = vunpack.c.l.s4 1983009808
    %v1535 = vunpack.c.0.s8 %v1534
    %v1536 = vperm.slane %v1528, %v1535
    %v1537 = vrot.slane %v1454, 4
    %v1538 = vsel %vm181, %v1537, %v1450
    %v1539 = vrot.slane %v1450, 4
    %v1540 = vsel %vm181, %v1454, %v1539
    %v1542 = vunpack.c.l.s4 1983009808
    %v1543 = vunpack.c.0.s8 %v1542
    %v1544 = vperm.slane %v1538, %v1543
    %v1546 = vunpack.c.l.s4 1983009808
    %v1547 = vunpack.c.0.s8 %v1546
    %v1548 = vperm.slane %v1540, %v1547
    %v1549 = vrot.slane %v1456, 4
    %v1550 = vsel %vm181, %v1549, %v1452
    %v1551 = vrot.slane %v1452, 4
    %v1552 = vsel %vm181, %v1456, %v1551
    %v1554 = vunpack.c.l.s4 1983009808
    %v1555 = vunpack.c.0.s8 %v1554
    %v1556 = vperm.slane %v1550, %v1555
    %v1558 = vunpack.c.l.s4 1983009808
    %v1559 = vunpack.c.0.s8 %v1558
    %v1560 = vperm.slane %v1552, %v1559
    %v1561 = vrot.slane %v1532, 4
    %v1562 = vsel %vm181, %v1561, %v1520
    %v1563 = vrot.slane %v1520, 4
    %v1564 = vsel %vm181, %v1532, %v1563
    %v1566 = vunpack.c.l.s4 1934713408
    %v1567 = vunpack.c.0.s8 %v1566
    %v1568 = vperm.slane %v1562, %v1567
    %v1570 = vunpack.c.l.s4 1934713408
    %v1571 = vunpack.c.0.s8 %v1570
    %v1572 = vperm.slane %v1564, %v1571
    %v1573 = vrot.slane %v1536, 4
    %v1574 = vsel %vm181, %v1573, %v1524
    %v1575 = vrot.slane %v1524, 4
    %v1576 = vsel %vm181, %v1536, %v1575
    %v1578 = vunpack.c.l.s4 1934713408
    %v1579 = vunpack.c.0.s8 %v1578
    %v1580 = vperm.slane %v1574, %v1579
    %v1582 = vunpack.c.l.s4 1934713408
    %v1583 = vunpack.c.0.s8 %v1582
    %v1584 = vperm.slane %v1576, %v1583
    %v1585 = vrot.slane %v1556, 4
    %v1586 = vsel %vm181, %v1585, %v1544
    %v1587 = vrot.slane %v1544, 4
    %v1588 = vsel %vm181, %v1556, %v1587
    %v1590 = vunpack.c.l.s4 1934713408
    %v1591 = vunpack.c.0.s8 %v1590
    %v1592 = vperm.slane %v1586, %v1591
    %v1594 = vunpack.c.l.s4 1934713408
    %v1595 = vunpack.c.0.s8 %v1594
    %v1596 = vperm.slane %v1588, %v1595
    %v1597 = vrot.slane %v1560, 4
    %v1598 = vsel %vm181, %v1597, %v1548
    %v1599 = vrot.slane %v1548, 4
    %v1600 = vsel %vm181, %v1560, %v1599
    %v1602 = vunpack.c.l.s4 1934713408
    %v1603 = vunpack.c.0.s8 %v1602
    %v1604 = vperm.slane %v1598, %v1603
    %v1606 = vunpack.c.l.s4 1934713408
    %v1607 = vunpack.c.0.s8 %v1606
    %v1608 = vperm.slane %v1600, %v1607
    %v1609 = vrot.slane %v1592, 4
    %v1610 = vsel %vm181, %v1609, %v1568
    %v1611 = vrot.slane %v1568, 4
    %v1612 = vsel %vm181, %v1592, %v1611
    %v1613 = vrot.slane %v1596, 4
    %v1614 = vsel %vm181, %v1613, %v1572
    %v1615 = vrot.slane %v1572, 4
    %v1616 = vsel %vm181, %v1596, %v1615
    %v1617 = vrot.slane %v1604, 4
    %v1618 = vsel %vm181, %v1617, %v1580
    %v1619 = vrot.slane %v1580, 4
    %v1620 = vsel %vm181, %v1604, %v1619
    %v1621 = vrot.slane %v1608, 4
    %v1622 = vsel %vm181, %v1621, %v1584
    %v1623 = vrot.slane %v1584, 4
    %v1624 = vsel %vm181, %v1608, %v1623
    %v1625 = vsel %vm181, %v1507, %v1488
    %v1627 = vunpack.c.l.s4 1983009808
    %v1628 = vunpack.c.0.s8 %v1627
    %v1629 = vperm.slane %v1625, %v1628
    %v1630 = vrot.slane %v1508, 4
    %v1631 = vsel %vm181, %v1630, %v1506
    %v1633 = vunpack.c.l.s4 1983009808
    %v1634 = vunpack.c.0.s8 %v1633
    %v1635 = vperm.slane %v1631, %v1634
    %v1636 = vsel %vm181, %v1511, %v1500
    %v1638 = vunpack.c.l.s4 1983009808
    %v1639 = vunpack.c.0.s8 %v1638
    %v1640 = vperm.slane %v1636, %v1639
    %v1641 = vrot.slane %v1512, 4
    %v1642 = vsel %vm181, %v1641, %v1510
    %v1644 = vunpack.c.l.s4 1983009808
    %v1645 = vunpack.c.0.s8 %v1644
    %v1646 = vperm.slane %v1642, %v1645
    %v1647 = vrot.slane %v1635, 4
    %v1648 = vsel %vm181, %v1647, %v1629
    %v1649 = vrot.slane %v1629, 4
    %v1650 = vsel %vm181, %v1635, %v1649
    %v1652 = vunpack.c.l.s4 1934713408
    %v1653 = vunpack.c.0.s8 %v1652
    %v1654 = vperm.slane %v1648, %v1653
    %v1656 = vunpack.c.l.s4 1934713408
    %v1657 = vunpack.c.0.s8 %v1656
    %v1658 = vperm.slane %v1650, %v1657
    %v1659 = vrot.slane %v1646, 4
    %v1660 = vsel %vm181, %v1659, %v1640
    %v1661 = vrot.slane %v1640, 4
    %v1662 = vsel %vm181, %v1646, %v1661
    %v1664 = vunpack.c.l.s4 1934713408
    %v1665 = vunpack.c.0.s8 %v1664
    %v1666 = vperm.slane %v1660, %v1665
    %v1668 = vunpack.c.l.s4 1934713408
    %v1669 = vunpack.c.0.s8 %v1668
    %v1670 = vperm.slane %v1662, %v1669
    %v1671 = vrot.slane %v1666, 4
    %v1672 = vsel %vm181, %v1671, %v1654
    %v1673 = vrot.slane %v1654, 4
    %v1674 = vsel %vm181, %v1666, %v1673
    %v1675 = vrot.slane %v1670, 4
    %v1676 = vsel %vm181, %v1675, %v1658
    %v1677 = vrot.slane %v1658, 4
    %v1678 = vsel %vm181, %v1670, %v1677
    %s1679 = sld [smem:[#allocation2 + $0x1]]
    %s1680 = scalar_lea.vmem [#allocation6], 8
    %v1681 = vld [vmem:[%s1680] sm:$0xff]
    %s1682 = smul.u32 %s1679, 32
    %s1683 = scalar_lea.vmem [#allocation9], %s1682
    %v1684 = vld [vmem:[%s1683] sm:$0xff]
    %v1685 = vld [vmem:[%s1683 + $0x8] sm:$0xff]
    %v1686 = vld [vmem:[%s1683 + $0x10] sm:$0xff]
    %v1687 = vld [vmem:[%s1683 + $0x18] sm:$0xff]
    %s1688 = scalar_lea.vmem %s5, %s1679
    %v1689 = vld [vmem:[%s1688] sm:$0x1]
    %v1691 = vperm.slane %v1689, 0
    %v1694 = vsel %vm116, %v1681, 0
    %1696 = vmatpush.msra.mxu0 0.0
    %1697 = vmatpush.msra.mxu0 0.0
    %1698 = vmatpush.msra.mxu0 0.0
    %1699 = vmatpush.msra.mxu0 0.0
    %1700 = vmatpush.msra.mxu0 0.0
    %1701 = vmatpush.msra.mxu0 0.0
    %1702 = vmatpush.msra.mxu0 0.0
    %1703 = vmatpush.msra.mxu0 0.0
    %1704 = vmatpush.msra.mxu0 0.0
    %1705 = vmatpush.msra.mxu0 0.0
    %1706 = vmatpush.msra.mxu0 0.0
    %1707 = vmatpush.msra.mxu0 0.0
    %1708 = vmatpush.msra.mxu0 %v1687
    %1709 = vmatpush.msra.mxu0 %v1686
    %1710 = vmatpush.msra.mxu0 %v1685
    %1711 = vmatpush.msra.mxu0 %v1684
    %1712 = vmatmul.f32.gmra.mxu0 %v1694
    %v1713 = vpop.f32.mrf.mxu0
    %v1714 = vadd.f32 %v1691, %v1713
    %1715 = vdwg.mxu0
    %1717 = vrot.lane.b32.xlu0 %v1714, 120
    %v1718 = vpop.permute.xlu0 %1717
    %1720 = vrot.lane.b32.xlu0 %v1714, 112
    %v1721 = vpop.permute.xlu0 %1720
    %1723 = vrot.lane.b32.xlu0 %v1714, 104
    %v1724 = vpop.permute.xlu0 %1723
    %1726 = vrot.lane.b32.xlu0 %v1714, 96
    %v1727 = vpop.permute.xlu0 %1726
    %1729 = vrot.lane.b32.xlu0 %v1714, 88
    %v1730 = vpop.permute.xlu0 %1729
    %1732 = vrot.lane.b32.xlu0 %v1714, 80
    %v1733 = vpop.permute.xlu0 %1732
    %1735 = vrot.lane.b32.xlu0 %v1714, 72
    %v1736 = vpop.permute.xlu0 %1735
    %v1738 = vrot.slane %v1721, 4
    %v1739 = vsel %vm181, %v1738, %v1714
    %v1740 = vrot.slane %v1714, 4
    %v1741 = vsel %vm181, %v1721, %v1740
    %v1743 = vunpack.c.l.s4 1983009808
    %v1744 = vunpack.c.0.s8 %v1743
    %v1745 = vperm.slane %v1739, %v1744
    %v1747 = vunpack.c.l.s4 1983009808
    %v1748 = vunpack.c.0.s8 %v1747
    %v1749 = vperm.slane %v1741, %v1748
    %v1750 = vrot.slane %v1724, 4
    %v1751 = vsel %vm181, %v1750, %v1718
    %v1752 = vrot.slane %v1718, 4
    %v1753 = vsel %vm181, %v1724, %v1752
    %v1755 = vunpack.c.l.s4 1983009808
    %v1756 = vunpack.c.0.s8 %v1755
    %v1757 = vperm.slane %v1751, %v1756
    %v1759 = vunpack.c.l.s4 1983009808
    %v1760 = vunpack.c.0.s8 %v1759
    %v1761 = vperm.slane %v1753, %v1760
    %v1762 = vrot.slane %v1733, 4
    %v1763 = vsel %vm181, %v1762, %v1727
    %v1764 = vrot.slane %v1727, 4
    %v1765 = vsel %vm181, %v1733, %v1764
    %v1767 = vunpack.c.l.s4 1983009808
    %v1768 = vunpack.c.0.s8 %v1767
    %v1769 = vperm.slane %v1763, %v1768
    %v1771 = vunpack.c.l.s4 1983009808
    %v1772 = vunpack.c.0.s8 %v1771
    %v1773 = vperm.slane %v1765, %v1772
    %v1774 = vrot.slane %v1736, 4
    %v1775 = vsel %vm181, %v1774, %v1730
    %v1776 = vrot.slane %v1730, 4
    %v1777 = vsel %vm181, %v1736, %v1776
    %v1779 = vunpack.c.l.s4 1983009808
    %v1780 = vunpack.c.0.s8 %v1779
    %v1781 = vperm.slane %v1775, %v1780
    %v1783 = vunpack.c.l.s4 1983009808
    %v1784 = vunpack.c.0.s8 %v1783
    %v1785 = vperm.slane %v1777, %v1784
    %v1786 = vrot.slane %v1757, 4
    %v1787 = vsel %vm181, %v1786, %v1745
    %v1788 = vrot.slane %v1745, 4
    %v1789 = vsel %vm181, %v1757, %v1788
    %v1791 = vunpack.c.l.s4 1934713408
    %v1792 = vunpack.c.0.s8 %v1791
    %v1793 = vperm.slane %v1787, %v1792
    %v1795 = vunpack.c.l.s4 1934713408
    %v1796 = vunpack.c.0.s8 %v1795
    %v1797 = vperm.slane %v1789, %v1796
    %v1798 = vrot.slane %v1761, 4
    %v1799 = vsel %vm181, %v1798, %v1749
    %v1800 = vrot.slane %v1749, 4
    %v1801 = vsel %vm181, %v1761, %v1800
    %v1803 = vunpack.c.l.s4 1934713408
    %v1804 = vunpack.c.0.s8 %v1803
    %v1805 = vperm.slane %v1799, %v1804
    %v1807 = vunpack.c.l.s4 1934713408
    %v1808 = vunpack.c.0.s8 %v1807
    %v1809 = vperm.slane %v1801, %v1808
    %v1810 = vrot.slane %v1781, 4
    %v1811 = vsel %vm181, %v1810, %v1769
    %v1812 = vrot.slane %v1769, 4
    %v1813 = vsel %vm181, %v1781, %v1812
    %v1815 = vunpack.c.l.s4 1934713408
    %v1816 = vunpack.c.0.s8 %v1815
    %v1817 = vperm.slane %v1811, %v1816
    %v1819 = vunpack.c.l.s4 1934713408
    %v1820 = vunpack.c.0.s8 %v1819
    %v1821 = vperm.slane %v1813, %v1820
    %v1822 = vrot.slane %v1785, 4
    %v1823 = vsel %vm181, %v1822, %v1773
    %v1824 = vrot.slane %v1773, 4
    %v1825 = vsel %vm181, %v1785, %v1824
    %v1827 = vunpack.c.l.s4 1934713408
    %v1828 = vunpack.c.0.s8 %v1827
    %v1829 = vperm.slane %v1823, %v1828
    %v1831 = vunpack.c.l.s4 1934713408
    %v1832 = vunpack.c.0.s8 %v1831
    %v1833 = vperm.slane %v1825, %v1832
    %v1834 = vrot.slane %v1817, 4
    %v1835 = vsel %vm181, %v1834, %v1793
    %v1836 = vrot.slane %v1793, 4
    %v1837 = vsel %vm181, %v1817, %v1836
    %v1838 = vrot.slane %v1821, 4
    %v1839 = vsel %vm181, %v1838, %v1797
    %v1840 = vrot.slane %v1797, 4
    %v1841 = vsel %vm181, %v1821, %v1840
    %v1842 = vrot.slane %v1829, 4
    %v1843 = vsel %vm181, %v1842, %v1805
    %v1844 = vrot.slane %v1805, 4
    %v1845 = vsel %vm181, %v1829, %v1844
    %v1846 = vrot.slane %v1833, 4
    %v1847 = vsel %vm181, %v1846, %v1809
    %v1848 = vrot.slane %v1809, 4
    %v1849 = vsel %vm181, %v1833, %v1848
    %v1850 = vrot.slane %v1839, 4
    %v1851 = vsel %vm181, %v1850, %v1835
    %v1852 = vrot.slane %v1835, 4
    %v1853 = vsel %vm181, %v1839, %v1852
    %v1855 = vunpack.c.l.s4 1983009808
    %v1856 = vunpack.c.0.s8 %v1855
    %v1857 = vperm.slane %v1851, %v1856
    %v1859 = vunpack.c.l.s4 1983009808
    %v1860 = vunpack.c.0.s8 %v1859
    %v1861 = vperm.slane %v1853, %v1860
    %v1862 = vrot.slane %v1841, 4
    %v1863 = vsel %vm181, %v1862, %v1837
    %v1864 = vrot.slane %v1837, 4
    %v1865 = vsel %vm181, %v1841, %v1864
    %v1867 = vunpack.c.l.s4 1983009808
    %v1868 = vunpack.c.0.s8 %v1867
    %v1869 = vperm.slane %v1863, %v1868
    %v1871 = vunpack.c.l.s4 1983009808
    %v1872 = vunpack.c.0.s8 %v1871
    %v1873 = vperm.slane %v1865, %v1872
    %v1874 = vrot.slane %v1847, 4
    %v1875 = vsel %vm181, %v1874, %v1843
    %v1876 = vrot.slane %v1843, 4
    %v1877 = vsel %vm181, %v1847, %v1876
    %v1879 = vunpack.c.l.s4 1983009808
    %v1880 = vunpack.c.0.s8 %v1879
    %v1881 = vperm.slane %v1875, %v1880
    %v1883 = vunpack.c.l.s4 1983009808
    %v1884 = vunpack.c.0.s8 %v1883
    %v1885 = vperm.slane %v1877, %v1884
    %v1886 = vrot.slane %v1849, 4
    %v1887 = vsel %vm181, %v1886, %v1845
    %v1888 = vrot.slane %v1845, 4
    %v1889 = vsel %vm181, %v1849, %v1888
    %v1891 = vunpack.c.l.s4 1983009808
    %v1892 = vunpack.c.0.s8 %v1891
    %v1893 = vperm.slane %v1887, %v1892
    %v1895 = vunpack.c.l.s4 1983009808
    %v1896 = vunpack.c.0.s8 %v1895
    %v1897 = vperm.slane %v1889, %v1896
    %v1898 = vrot.slane %v1869, 4
    %v1899 = vsel %vm181, %v1898, %v1857
    %v1900 = vrot.slane %v1857, 4
    %v1901 = vsel %vm181, %v1869, %v1900
    %v1903 = vunpack.c.l.s4 1934713408
    %v1904 = vunpack.c.0.s8 %v1903
    %v1905 = vperm.slane %v1899, %v1904
    %v1907 = vunpack.c.l.s4 1934713408
    %v1908 = vunpack.c.0.s8 %v1907
    %v1909 = vperm.slane %v1901, %v1908
    %v1910 = vrot.slane %v1873, 4
    %v1911 = vsel %vm181, %v1910, %v1861
    %v1912 = vrot.slane %v1861, 4
    %v1913 = vsel %vm181, %v1873, %v1912
    %v1915 = vunpack.c.l.s4 1934713408
    %v1916 = vunpack.c.0.s8 %v1915
    %v1917 = vperm.slane %v1911, %v1916
    %v1919 = vunpack.c.l.s4 1934713408
    %v1920 = vunpack.c.0.s8 %v1919
    %v1921 = vperm.slane %v1913, %v1920
    %v1922 = vrot.slane %v1893, 4
    %v1923 = vsel %vm181, %v1922, %v1881
    %v1924 = vrot.slane %v1881, 4
    %v1925 = vsel %vm181, %v1893, %v1924
    %v1927 = vunpack.c.l.s4 1934713408
    %v1928 = vunpack.c.0.s8 %v1927
    %v1929 = vperm.slane %v1923, %v1928
    %v1931 = vunpack.c.l.s4 1934713408
    %v1932 = vunpack.c.0.s8 %v1931
    %v1933 = vperm.slane %v1925, %v1932
    %v1934 = vrot.slane %v1897, 4
    %v1935 = vsel %vm181, %v1934, %v1885
    %v1936 = vrot.slane %v1885, 4
    %v1937 = vsel %vm181, %v1897, %v1936
    %v1939 = vunpack.c.l.s4 1934713408
    %v1940 = vunpack.c.0.s8 %v1939
    %v1941 = vperm.slane %v1935, %v1940
    %v1943 = vunpack.c.l.s4 1934713408
    %v1944 = vunpack.c.0.s8 %v1943
    %v1945 = vperm.slane %v1937, %v1944
    %v1946 = vrot.slane %v1929, 4
    %v1947 = vsel %vm181, %v1946, %v1905
    %v1948 = vrot.slane %v1905, 4
    %v1949 = vsel %vm181, %v1929, %v1948
    %v1950 = vrot.slane %v1933, 4
    %v1951 = vsel %vm181, %v1950, %v1909
    %v1952 = vrot.slane %v1909, 4
    %v1953 = vsel %vm181, %v1933, %v1952
    %v1954 = vrot.slane %v1941, 4
    %v1955 = vsel %vm181, %v1954, %v1917
    %v1956 = vrot.slane %v1917, 4
    %v1957 = vsel %vm181, %v1941, %v1956
    %v1958 = vrot.slane %v1945, 4
    %v1959 = vsel %vm181, %v1958, %v1921
    %v1960 = vrot.slane %v1921, 4
    %v1961 = vsel %vm181, %v1945, %v1960
    %v1963 = vsel %vm797, %v1610, 0
    %v1966 = vsel %vm797, %v1618, 0
    %1968 = vmatpush.xpose.msra.mxu0 0.0
    %1969 = vmatpush.xpose.msra.mxu0 0.0
    %1970 = vmatpush.xpose.msra.mxu0 0.0
    %1971 = vmatpush.xpose.msra.mxu0 0.0
    %1972 = vmatpush.xpose.msra.mxu0 0.0
    %1973 = vmatpush.xpose.msra.mxu0 0.0
    %1974 = vmatpush.xpose.msra.mxu0 0.0
    %1975 = vmatpush.xpose.msra.mxu0 0.0
    %1976 = vmatpush.xpose.msra.mxu0 0.0
    %1977 = vmatpush.xpose.msra.mxu0 0.0
    %1978 = vmatpush.xpose.msra.mxu0 0.0
    %1979 = vmatpush.xpose.msra.mxu0 0.0
    %1980 = vmatpush.xpose.msra.mxu0 0.0
    %1981 = vmatpush.xpose.msra.mxu0 0.0
    %1982 = vmatpush.xpose.msra.mxu0 0.0
    %1983 = vmatpush.xpose.msra.mxu0 %v1966
    %1984 = vmatmul.f32.gmra.mxu0 %v1963
    %v1985 = vpop.f32.mrf.mxu0
    %v1986 = vadd.f32 0.0, %v1985
    %1987 = vdwg.mxu0
    %v1989 = vsel %vm797, %v1612, 0
    %v1992 = vsel %vm797, %v1620, 0
    %1994 = vmatpush.xpose.msra.mxu0 0.0
    %1995 = vmatpush.xpose.msra.mxu0 0.0
    %1996 = vmatpush.xpose.msra.mxu0 0.0
    %1997 = vmatpush.xpose.msra.mxu0 0.0
    %1998 = vmatpush.xpose.msra.mxu0 0.0
    %1999 = vmatpush.xpose.msra.mxu0 0.0
    %2000 = vmatpush.xpose.msra.mxu0 0.0
    %2001 = vmatpush.xpose.msra.mxu0 0.0
    %2002 = vmatpush.xpose.msra.mxu0 0.0
    %2003 = vmatpush.xpose.msra.mxu0 0.0
    %2004 = vmatpush.xpose.msra.mxu0 0.0
    %2005 = vmatpush.xpose.msra.mxu0 0.0
    %2006 = vmatpush.xpose.msra.mxu0 0.0
    %2007 = vmatpush.xpose.msra.mxu0 0.0
    %2008 = vmatpush.xpose.msra.mxu0 0.0
    %2009 = vmatpush.xpose.msra.mxu0 %v1992
    %2010 = vmatmul.f32.gmra.mxu0 %v1989
    %v2011 = vpop.f32.mrf.mxu0
    %v2012 = vadd.f32 0.0, %v2011
    %2013 = vdwg.mxu0
    %v2015 = vsel %vm797, %v1614, 0
    %v2018 = vsel %vm797, %v1622, 0
    %2020 = vmatpush.xpose.msra.mxu0 0.0
    %2021 = vmatpush.xpose.msra.mxu0 0.0
    %2022 = vmatpush.xpose.msra.mxu0 0.0
    %2023 = vmatpush.xpose.msra.mxu0 0.0
    %2024 = vmatpush.xpose.msra.mxu0 0.0
    %2025 = vmatpush.xpose.msra.mxu0 0.0
    %2026 = vmatpush.xpose.msra.mxu0 0.0
    %2027 = vmatpush.xpose.msra.mxu0 0.0
    %2028 = vmatpush.xpose.msra.mxu0 0.0
    %2029 = vmatpush.xpose.msra.mxu0 0.0
    %2030 = vmatpush.xpose.msra.mxu0 0.0
    %2031 = vmatpush.xpose.msra.mxu0 0.0
    %2032 = vmatpush.xpose.msra.mxu0 0.0
    %2033 = vmatpush.xpose.msra.mxu0 0.0
    %2034 = vmatpush.xpose.msra.mxu0 0.0
    %2035 = vmatpush.xpose.msra.mxu0 %v2018
    %2036 = vmatmul.f32.gmra.mxu0 %v2015
    %v2037 = vpop.f32.mrf.mxu0
    %v2038 = vadd.f32 0.0, %v2037
    %2039 = vdwg.mxu0
    %v2041 = vsel %vm797, %v1616, 0
    %v2044 = vsel %vm797, %v1624, 0
    %2046 = vmatpush.xpose.msra.mxu0 0.0
    %2047 = vmatpush.xpose.msra.mxu0 0.0
    %2048 = vmatpush.xpose.msra.mxu0 0.0
    %2049 = vmatpush.xpose.msra.mxu0 0.0
    %2050 = vmatpush.xpose.msra.mxu0 0.0
    %2051 = vmatpush.xpose.msra.mxu0 0.0
    %2052 = vmatpush.xpose.msra.mxu0 0.0
    %2053 = vmatpush.xpose.msra.mxu0 0.0
    %2054 = vmatpush.xpose.msra.mxu0 0.0
    %2055 = vmatpush.xpose.msra.mxu0 0.0
    %2056 = vmatpush.xpose.msra.mxu0 0.0
    %2057 = vmatpush.xpose.msra.mxu0 0.0
    %2058 = vmatpush.xpose.msra.mxu0 0.0
    %2059 = vmatpush.xpose.msra.mxu0 0.0
    %2060 = vmatpush.xpose.msra.mxu0 0.0
    %2061 = vmatpush.xpose.msra.mxu0 %v2044
    %2062 = vmatmul.f32.gmra.mxu0 %v2041
    %v2063 = vpop.f32.mrf.mxu0
    %v2064 = vadd.f32 0.0, %v2063
    %2065 = vdwg.mxu0
    %v2067 = vsel %vm797, %v1947, 0
    %v2070 = vsel %vm797, %v1955, 0
    %2072 = vmatpush.xpose.msra.mxu0 0.0
    %2073 = vmatpush.xpose.msra.mxu0 0.0
    %2074 = vmatpush.xpose.msra.mxu0 0.0
    %2075 = vmatpush.xpose.msra.mxu0 0.0
    %2076 = vmatpush.xpose.msra.mxu0 0.0
    %2077 = vmatpush.xpose.msra.mxu0 0.0
    %2078 = vmatpush.xpose.msra.mxu0 0.0
    %2079 = vmatpush.xpose.msra.mxu0 0.0
    %2080 = vmatpush.xpose.msra.mxu0 0.0
    %2081 = vmatpush.xpose.msra.mxu0 0.0
    %2082 = vmatpush.xpose.msra.mxu0 0.0
    %2083 = vmatpush.xpose.msra.mxu0 0.0
    %2084 = vmatpush.xpose.msra.mxu0 0.0
    %2085 = vmatpush.xpose.msra.mxu0 0.0
    %2086 = vmatpush.xpose.msra.mxu0 0.0
    %2087 = vmatpush.xpose.msra.mxu0 %v2070
    %2088 = vmatmul.f32.gmra.mxu0 %v2067
    %v2089 = vpop.f32.mrf.mxu0
    %v2090 = vadd.f32 0.0, %v2089
    %2091 = vdwg.mxu0
    %v2093 = vsel %vm797, %v1949, 0
    %v2096 = vsel %vm797, %v1957, 0
    %2098 = vmatpush.xpose.msra.mxu0 0.0
    %2099 = vmatpush.xpose.msra.mxu0 0.0
    %2100 = vmatpush.xpose.msra.mxu0 0.0
    %2101 = vmatpush.xpose.msra.mxu0 0.0
    %2102 = vmatpush.xpose.msra.mxu0 0.0
    %2103 = vmatpush.xpose.msra.mxu0 0.0
    %2104 = vmatpush.xpose.msra.mxu0 0.0
    %2105 = vmatpush.xpose.msra.mxu0 0.0
    %2106 = vmatpush.xpose.msra.mxu0 0.0
    %2107 = vmatpush.xpose.msra.mxu0 0.0
    %2108 = vmatpush.xpose.msra.mxu0 0.0
    %2109 = vmatpush.xpose.msra.mxu0 0.0
    %2110 = vmatpush.xpose.msra.mxu0 0.0
    %2111 = vmatpush.xpose.msra.mxu0 0.0
    %2112 = vmatpush.xpose.msra.mxu0 0.0
    %2113 = vmatpush.xpose.msra.mxu0 %v2096
    %2114 = vmatmul.f32.gmra.mxu0 %v2093
    %v2115 = vpop.f32.mrf.mxu0
    %v2116 = vadd.f32 0.0, %v2115
    %2117 = vdwg.mxu0
    %v2119 = vsel %vm797, %v1951, 0
    %v2122 = vsel %vm797, %v1959, 0
    %2124 = vmatpush.xpose.msra.mxu0 0.0
    %2125 = vmatpush.xpose.msra.mxu0 0.0
    %2126 = vmatpush.xpose.msra.mxu0 0.0
    %2127 = vmatpush.xpose.msra.mxu0 0.0
    %2128 = vmatpush.xpose.msra.mxu0 0.0
    %2129 = vmatpush.xpose.msra.mxu0 0.0
    %2130 = vmatpush.xpose.msra.mxu0 0.0
    %2131 = vmatpush.xpose.msra.mxu0 0.0
    %2132 = vmatpush.xpose.msra.mxu0 0.0
    %2133 = vmatpush.xpose.msra.mxu0 0.0
    %2134 = vmatpush.xpose.msra.mxu0 0.0
    %2135 = vmatpush.xpose.msra.mxu0 0.0
    %2136 = vmatpush.xpose.msra.mxu0 0.0
    %2137 = vmatpush.xpose.msra.mxu0 0.0
    %2138 = vmatpush.xpose.msra.mxu0 0.0
    %2139 = vmatpush.xpose.msra.mxu0 %v2122
    %2140 = vmatmul.f32.gmra.mxu0 %v2119
    %v2141 = vpop.f32.mrf.mxu0
    %v2142 = vadd.f32 0.0, %v2141
    %2143 = vdwg.mxu0
    %v2145 = vsel %vm797, %v1953, 0
    %v2148 = vsel %vm797, %v1961, 0
    %2150 = vmatpush.xpose.msra.mxu0 0.0
    %2151 = vmatpush.xpose.msra.mxu0 0.0
    %2152 = vmatpush.xpose.msra.mxu0 0.0
    %2153 = vmatpush.xpose.msra.mxu0 0.0
    %2154 = vmatpush.xpose.msra.mxu0 0.0
    %2155 = vmatpush.xpose.msra.mxu0 0.0
    %2156 = vmatpush.xpose.msra.mxu0 0.0
    %2157 = vmatpush.xpose.msra.mxu0 0.0
    %2158 = vmatpush.xpose.msra.mxu0 0.0
    %2159 = vmatpush.xpose.msra.mxu0 0.0
    %2160 = vmatpush.xpose.msra.mxu0 0.0
    %2161 = vmatpush.xpose.msra.mxu0 0.0
    %2162 = vmatpush.xpose.msra.mxu0 0.0
    %2163 = vmatpush.xpose.msra.mxu0 0.0
    %2164 = vmatpush.xpose.msra.mxu0 0.0
    %2165 = vmatpush.xpose.msra.mxu0 %v2148
    %2166 = vmatmul.f32.gmra.mxu0 %v2145
    %v2167 = vpop.f32.mrf.mxu0
    %v2168 = vadd.f32 0.0, %v2167
    %2169 = vdwg.mxu0
    %v2170 = vsel %vm797, %v1986, -inf
    %2171 = vmax.xlane.f32.xlu0 %v2170
    %v2172 = vpop.xlane.xlu0 %2171
    %v2173 = vsel %vm797, %v2012, -inf
    %2174 = vmax.xlane.f32.xlu0 %v2173
    %v2175 = vpop.xlane.xlu0 %2174
    %v2176 = vsel %vm797, %v2038, -inf
    %2177 = vmax.xlane.f32.xlu0 %v2176
    %v2178 = vpop.xlane.xlu0 %2177
    %v2179 = vsel %vm797, %v2064, -inf
    %2180 = vmax.xlane.f32.xlu0 %v2179
    %v2181 = vpop.xlane.xlu0 %2180
    %v2182 = vsel %vm797, %v2090, -inf
    %2183 = vmax.xlane.f32.xlu0 %v2182
    %v2184 = vpop.xlane.xlu0 %2183
    %v2185 = vsel %vm797, %v2116, -inf
    %2186 = vmax.xlane.f32.xlu0 %v2185
    %v2187 = vpop.xlane.xlu0 %2186
    %v2188 = vsel %vm797, %v2142, -inf
    %2189 = vmax.xlane.f32.xlu0 %v2188
    %v2190 = vpop.xlane.xlu0 %2189
    %v2191 = vsel %vm797, %v2168, -inf
    %2192 = vmax.xlane.f32.xlu0 %v2191
    %v2193 = vpop.xlane.xlu0 %2192
    %v2194 = vsub.f32 %v1986, %v2172
    %v2195 = vsub.f32 %v2012, %v2175
    %v2196 = vsub.f32 %v2038, %v2178
    %v2197 = vsub.f32 %v2064, %v2181
    %v2198 = vsub.f32 %v2090, %v2184
    %v2199 = vsub.f32 %v2116, %v2187
    %v2200 = vsub.f32 %v2142, %v2190
    %v2201 = vsub.f32 %v2168, %v2193
    %v2202 = vmul.f32 %v2194, 1.442695
    %v2203 = vpow.pop %v2202
    %v2204 = vmul.f32 %v2195, 1.442695
    %v2205 = vpow.pop %v2204
    %v2206 = vmul.f32 %v2196, 1.442695
    %v2207 = vpow.pop %v2206
    %v2208 = vmul.f32 %v2197, 1.442695
    %v2209 = vpow.pop %v2208
    %v2210 = vmul.f32 %v2198, 1.442695
    %v2211 = vpow.pop %v2210
    %v2212 = vmul.f32 %v2199, 1.442695
    %v2213 = vpow.pop %v2212
    %v2214 = vmul.f32 %v2200, 1.442695
    %v2215 = vpow.pop %v2214
    %v2216 = vmul.f32 %v2201, 1.442695
    %v2217 = vpow.pop %v2216
    %v2218 = vsel %vm797, %v2203, 0.0
    %2219 = vadd.xlane.f32.xlu0 %v2218
    %v2220 = vpop.xlane.xlu0 %2219
    %v2221 = vsel %vm797, %v2205, 0.0
    %2222 = vadd.xlane.f32.xlu0 %v2221
    %v2223 = vpop.xlane.xlu0 %2222
    %v2224 = vsel %vm797, %v2207, 0.0
    %2225 = vadd.xlane.f32.xlu0 %v2224
    %v2226 = vpop.xlane.xlu0 %2225
    %v2227 = vsel %vm797, %v2209, 0.0
    %2228 = vadd.xlane.f32.xlu0 %v2227
    %v2229 = vpop.xlane.xlu0 %2228
    %v2230 = vsel %vm797, %v2211, 0.0
    %2231 = vadd.xlane.f32.xlu0 %v2230
    %v2232 = vpop.xlane.xlu0 %2231
    %v2233 = vsel %vm797, %v2213, 0.0
    %2234 = vadd.xlane.f32.xlu0 %v2233
    %v2235 = vpop.xlane.xlu0 %2234
    %v2236 = vsel %vm797, %v2215, 0.0
    %2237 = vadd.xlane.f32.xlu0 %v2236
    %v2238 = vpop.xlane.xlu0 %2237
    %v2239 = vsel %vm797, %v2217, 0.0
    %2240 = vadd.xlane.f32.xlu0 %v2239
    %v2241 = vpop.xlane.xlu0 %2240
    %v2242 = vrcp.pop %v2220
    %v2243 = vrcp.pop %v2223
    %v2244 = vrcp.pop %v2226
    %v2245 = vrcp.pop %v2229
    %v2246 = vrcp.pop %v2232
    %v2247 = vrcp.pop %v2235
    %v2248 = vrcp.pop %v2238
    %v2249 = vrcp.pop %v2241
    %v2250 = vmul.f32 %v2203, %v2242
    %v2251 = vmul.f32 %v2205, %v2243
    %v2252 = vmul.f32 %v2207, %v2244
    %v2253 = vmul.f32 %v2209, %v2245
    %v2254 = vmul.f32 %v2211, %v2246
    %v2255 = vmul.f32 %v2213, %v2247
    %v2256 = vmul.f32 %v2215, %v2248
    %v2257 = vmul.f32 %v2217, %v2249
    %v2258 = vmul.f32 %v2254, 0.1
    %v2259 = vmul.f32 %v2255, 0.1
    %v2260 = vmul.f32 %v2256, 0.1
    %v2261 = vmul.f32 %v2257, 0.1
    %v2262 = vmul.f32 %v2250, 0.9
    %v2263 = vmul.f32 %v2251, 0.9
    %v2264 = vmul.f32 %v2252, 0.9
    %v2265 = vmul.f32 %v2253, 0.9
    %v2266 = vadd.f32 %v2258, %v2262
    %v2267 = vadd.f32 %v2259, %v2263
    %v2268 = vadd.f32 %v2260, %v2264
    %v2269 = vadd.f32 %v2261, %v2265
    %v2270 = vmul.f32 %v2266, 0.5
    %v2271 = vmul.f32 %v2267, 0.5
    %v2272 = vmul.f32 %v2268, 0.5
    %v2273 = vmul.f32 %v2269, 0.5
    %v2275 = vsel %vm797, %v2270, 0
    %2277 = vmatpush.msra.mxu0 0.0
    %2278 = vmatpush.msra.mxu0 0.0
    %2279 = vmatpush.msra.mxu0 0.0
    %2280 = vmatpush.msra.mxu0 0.0
    %2281 = vmatpush.msra.mxu0 0.0
    %2282 = vmatpush.msra.mxu0 0.0
    %2283 = vmatpush.msra.mxu0 0.0
    %2284 = vmatpush.msra.mxu0 0.0
    %2285 = vmatpush.msra.mxu0 0.0
    %2286 = vmatpush.msra.mxu0 0.0
    %2287 = vmatpush.msra.mxu0 0.0
    %2288 = vmatpush.msra.mxu0 0.0
    %2289 = vmatpush.msra.mxu0 0.0
    %2290 = vmatpush.msra.mxu0 0.0
    %2291 = vmatpush.msra.mxu0 0.0
    %2292 = vmatpush.msra.mxu0 %v1672
    %2293 = vmatmul.f32.gmra.mxu0 %v2275
    %v2294 = vpop.f32.mrf.mxu0
    %v2295 = vadd.f32 0.0, %v2294
    %2296 = vdwg.mxu0
    %v2298 = vsel %vm797, %v2271, 0
    %2300 = vmatpush.msra.mxu0 0.0
    %2301 = vmatpush.msra.mxu0 0.0
    %2302 = vmatpush.msra.mxu0 0.0
    %2303 = vmatpush.msra.mxu0 0.0
    %2304 = vmatpush.msra.mxu0 0.0
    %2305 = vmatpush.msra.mxu0 0.0
    %2306 = vmatpush.msra.mxu0 0.0
    %2307 = vmatpush.msra.mxu0 0.0
    %2308 = vmatpush.msra.mxu0 0.0
    %2309 = vmatpush.msra.mxu0 0.0
    %2310 = vmatpush.msra.mxu0 0.0
    %2311 = vmatpush.msra.mxu0 0.0
    %2312 = vmatpush.msra.mxu0 0.0
    %2313 = vmatpush.msra.mxu0 0.0
    %2314 = vmatpush.msra.mxu0 0.0
    %2315 = vmatpush.msra.mxu0 %v1674
    %2316 = vmatmul.f32.gmra.mxu0 %v2298
    %v2317 = vpop.f32.mrf.mxu0
    %v2318 = vadd.f32 0.0, %v2317
    %2319 = vdwg.mxu0
    %v2321 = vsel %vm797, %v2272, 0
    %2323 = vmatpush.msra.mxu0 0.0
    %2324 = vmatpush.msra.mxu0 0.0
    %2325 = vmatpush.msra.mxu0 0.0
    %2326 = vmatpush.msra.mxu0 0.0
    %2327 = vmatpush.msra.mxu0 0.0
    %2328 = vmatpush.msra.mxu0 0.0
    %2329 = vmatpush.msra.mxu0 0.0
    %2330 = vmatpush.msra.mxu0 0.0
    %2331 = vmatpush.msra.mxu0 0.0
    %2332 = vmatpush.msra.mxu0 0.0
    %2333 = vmatpush.msra.mxu0 0.0
    %2334 = vmatpush.msra.mxu0 0.0
    %2335 = vmatpush.msra.mxu0 0.0
    %2336 = vmatpush.msra.mxu0 0.0
    %2337 = vmatpush.msra.mxu0 0.0
    %2338 = vmatpush.msra.mxu0 %v1676
    %2339 = vmatmul.f32.gmra.mxu0 %v2321
    %v2340 = vpop.f32.mrf.mxu0
    %v2341 = vadd.f32 0.0, %v2340
    %2342 = vdwg.mxu0
    %v2344 = vsel %vm797, %v2273, 0
    %2346 = vmatpush.msra.mxu0 0.0
    %2347 = vmatpush.msra.mxu0 0.0
    %2348 = vmatpush.msra.mxu0 0.0
    %2349 = vmatpush.msra.mxu0 0.0
    %2350 = vmatpush.msra.mxu0 0.0
    %2351 = vmatpush.msra.mxu0 0.0
    %2352 = vmatpush.msra.mxu0 0.0
    %2353 = vmatpush.msra.mxu0 0.0
    %2354 = vmatpush.msra.mxu0 0.0
    %2355 = vmatpush.msra.mxu0 0.0
    %2356 = vmatpush.msra.mxu0 0.0
    %2357 = vmatpush.msra.mxu0 0.0
    %2358 = vmatpush.msra.mxu0 0.0
    %2359 = vmatpush.msra.mxu0 0.0
    %2360 = vmatpush.msra.mxu0 0.0
    %2361 = vmatpush.msra.mxu0 %v1678
    %2362 = vmatmul.f32.gmra.mxu0 %v2344
    %v2363 = vpop.f32.mrf.mxu0
    %v2364 = vadd.f32 0.0, %v2363
    %2365 = vdwg.mxu0
    %v2366 = vld [vmem:[#allocation10] sm:$0xff]
    %v2367 = vld [vmem:[#allocation10 + $0x8] sm:$0xff]
    %v2368 = vld [vmem:[#allocation10 + $0x10] sm:$0xff]
    %v2369 = vld [vmem:[#allocation10 + $0x18] sm:$0xff]
    %v2371 = vsel %vm797, %v2295, 0
    %2373 = vmatpush.msra.mxu0 0.0
    %2374 = vmatpush.msra.mxu0 0.0
    %2375 = vmatpush.msra.mxu0 0.0
    %2376 = vmatpush.msra.mxu0 0.0
    %2377 = vmatpush.msra.mxu0 0.0
    %2378 = vmatpush.msra.mxu0 0.0
    %2379 = vmatpush.msra.mxu0 0.0
    %2380 = vmatpush.msra.mxu0 0.0
    %2381 = vmatpush.msra.mxu0 0.0
    %2382 = vmatpush.msra.mxu0 0.0
    %2383 = vmatpush.msra.mxu0 0.0
    %2384 = vmatpush.msra.mxu0 0.0
    %2385 = vmatpush.msra.mxu0 0.0
    %2386 = vmatpush.msra.mxu0 0.0
    %2387 = vmatpush.msra.mxu0 0.0
    %2388 = vmatpush.msra.mxu0 %v2366
    %2389 = vmatmul.f32.gmra.mxu0 %v2371
    %v2390 = vpop.f32.mrf.mxu0
    %v2391 = vadd.f32 0.0, %v2390
    %2392 = vdwg.mxu0
    %v2394 = vsel %vm797, %v2318, 0
    %2396 = vmatpush.msra.mxu0 0.0
    %2397 = vmatpush.msra.mxu0 0.0
    %2398 = vmatpush.msra.mxu0 0.0
    %2399 = vmatpush.msra.mxu0 0.0
    %2400 = vmatpush.msra.mxu0 0.0
    %2401 = vmatpush.msra.mxu0 0.0
    %2402 = vmatpush.msra.mxu0 0.0
    %2403 = vmatpush.msra.mxu0 0.0
    %2404 = vmatpush.msra.mxu0 0.0
    %2405 = vmatpush.msra.mxu0 0.0
    %2406 = vmatpush.msra.mxu0 0.0
    %2407 = vmatpush.msra.mxu0 0.0
    %2408 = vmatpush.msra.mxu0 0.0
    %2409 = vmatpush.msra.mxu0 0.0
    %2410 = vmatpush.msra.mxu0 0.0
    %2411 = vmatpush.msra.mxu0 %v2367
    %2412 = vmatmul.f32.gmra.mxu0 %v2394
    %v2413 = vpop.f32.mrf.mxu0
    %v2414 = vadd.f32 0.0, %v2413
    %2415 = vdwg.mxu0
    %v2417 = vsel %vm797, %v2341, 0
    %2419 = vmatpush.msra.mxu0 0.0
    %2420 = vmatpush.msra.mxu0 0.0
    %2421 = vmatpush.msra.mxu0 0.0
    %2422 = vmatpush.msra.mxu0 0.0
    %2423 = vmatpush.msra.mxu0 0.0
    %2424 = vmatpush.msra.mxu0 0.0
    %2425 = vmatpush.msra.mxu0 0.0
    %2426 = vmatpush.msra.mxu0 0.0
    %2427 = vmatpush.msra.mxu0 0.0
    %2428 = vmatpush.msra.mxu0 0.0
    %2429 = vmatpush.msra.mxu0 0.0
    %2430 = vmatpush.msra.mxu0 0.0
    %2431 = vmatpush.msra.mxu0 0.0
    %2432 = vmatpush.msra.mxu0 0.0
    %2433 = vmatpush.msra.mxu0 0.0
    %2434 = vmatpush.msra.mxu0 %v2368
    %2435 = vmatmul.f32.gmra.mxu0 %v2417
    %v2436 = vpop.f32.mrf.mxu0
    %v2437 = vadd.f32 0.0, %v2436
    %2438 = vdwg.mxu0
    %v2440 = vsel %vm797, %v2364, 0
    %2442 = vmatpush.msra.mxu0 0.0
    %2443 = vmatpush.msra.mxu0 0.0
    %2444 = vmatpush.msra.mxu0 0.0
    %2445 = vmatpush.msra.mxu0 0.0
    %2446 = vmatpush.msra.mxu0 0.0
    %2447 = vmatpush.msra.mxu0 0.0
    %2448 = vmatpush.msra.mxu0 0.0
    %2449 = vmatpush.msra.mxu0 0.0
    %2450 = vmatpush.msra.mxu0 0.0
    %2451 = vmatpush.msra.mxu0 0.0
    %2452 = vmatpush.msra.mxu0 0.0
    %2453 = vmatpush.msra.mxu0 0.0
    %2454 = vmatpush.msra.mxu0 0.0
    %2455 = vmatpush.msra.mxu0 0.0
    %2456 = vmatpush.msra.mxu0 0.0
    %2457 = vmatpush.msra.mxu0 %v2369
    %2458 = vmatmul.f32.gmra.mxu0 %v2440
    %v2459 = vpop.f32.mrf.mxu0
    %v2460 = vadd.f32 0.0, %v2459
    %2461 = vdwg.mxu0
    %v2462 = vsel %vm116, %v2391, 0.0
    %v2463 = vsel %vm116, %v2414, 0.0
    %v2464 = vadd.f32 %v2462, %v2463
    %v2465 = vsel %vm116, %v2437, 0.0
    %v2466 = vadd.f32 %v2464, %v2465
    %v2467 = vsel %vm116, %v2460, 0.0
    %v2468 = vadd.f32 %v2466, %v2467
    %v2469 = vld [vmem:[%s7] sm:$0x1]
    %v2471 = vperm.slane %v2469, 0
    %v2473 = vadd.f32 %v2468, %v2471
    %s2474 = scalar_lea.vmem [#allocation12], 8
    %2475 = vst.msk [vmem:[%s2474] sm:$0xff] %vm116, %v2473
    // Predicated region
    $region54: #{tpu_custom_call.1} parent=1 // pred_check
      _
    $region55: #{tpu_custom_call.1} parent=1 // pred_check_branch
      %2477 = sbr.rel (0) target = $region57
    $region56: #{tpu_custom_call.1} parent=1 // pred_region
      %2479 = vsyncadd [#allocation4], 0
      %s2480 = sshll.u32 [#allocation12], 4
      %s2481 = int_to_ptr.vmem [resolvable:$true] %s2480
      %s2482 = sshll.u32 %s8, 4
      %s2483 = int_to_ptr.hbm [resolvable:$true] %s2482
      %2488 = dma.vmem_to_hbm [thread:$0]  %s2481, 256, %s2483, [#allocation4], 128, 128, 8
    $region57: #{tpu_custom_call.1} parent=1 // pred_fallthru
      _
    // Predicated region
    $region58: #{tpu_custom_call.1} parent=1 // pred_check
      _
    $region59: #{tpu_custom_call.1} parent=1 // pred_check_branch
      %2490 = sbr.rel (0) target = $region61
    $region60: #{tpu_custom_call.1} parent=1 // pred_region
      %2492 = dma.done [#allocation4], 256
    $region61: #{tpu_custom_call.1} parent=1 // pred_fallthru
      _
    %2493 = vsyncpa [#allocation3], 1
    %2494 = vsyncpa [#allocation8], 1
    %2495 = vsyncpa [#allocation11], 1
    %2496 = vsyncpa [#allocation4], 1
    %2497 = vsyncpa [#allocation5], 1

</llo_original>
